<compile_context>
chip_gen: v5e
topology: v5e:2x2
jax: 0.10.0
libtpu: 0.0.40
codegen_flags: <defaults>
</compile_context>

<pallas_src>
import math
import functools

import jax
import jax.numpy as jnp
from jax.experimental import pallas as pl
from jax.experimental.pallas import tpu as pltpu


# ----------------------------------------------------------------------------
# Single fused kernel: all encoder layers + decoder projection, no grid
# ----------------------------------------------------------------------------
def _layernorm(x, g, b):
    mean = jnp.mean(x, axis=-1, keepdims=True)
    var = jnp.mean(jnp.square(x - mean), axis=-1, keepdims=True)
    return (x - mean) * jax.lax.rsqrt(var + 1e-5) * g + b


def _fused_kernel(x_ref,
                  in_w_ref, in_b_ref, out_w_ref, out_b_ref,
                  ff1_w_ref, ff1_b_ref, ff2_w_ref, ff2_b_ref,
                  ln1_g_ref, ln1_b_ref, ln2_g_ref, ln2_b_ref,
                  dec_w_ref, dec_b_ref,
                  logits_ref,
                  *, num_layers, nhead, batch, seq):
    D = x_ref.shape[-1]
    hd = D // nhead
    BS = batch * seq

    x = x_ref[...]                                           # (B*S, D) f32

    for l in range(num_layers):                              # static unroll (L=2)
        w_in = in_w_ref[l]                                   # (D, 3D) q-scale prefolded
        b_in = in_b_ref[l]                                   # (1, 3D)
        w_out = out_w_ref[l]                                 # (D, D)

        # ---- self attention --------------------------------------------------
        qkv = jnp.dot(x, w_in, preferred_element_type=jnp.float32) + b_in
        qkv3 = qkv.reshape(batch, seq, 3 * D)                # (B, S, 3D)

        ctx = None
        for h in range(nhead):                               # static unroll (4 heads)
            q = qkv3[:, :, h * hd:(h + 1) * hd]              # (B, S, hd)
            k = qkv3[:, :, D + h * hd:D + (h + 1) * hd]
            v = qkv3[:, :, 2 * D + h * hd:2 * D + (h + 1) * hd]
            # scores: contract last dims (no explicit k transpose), batch over B
            s = jax.lax.dot_general(
                q, k, (((2,), (2,)), ((0,), (0,))),
                preferred_element_type=jnp.float32)          # (B, S, S)
            m = jnp.max(s, axis=-1, keepdims=True)
            p = jnp.exp(s - m)
            p = p / jnp.sum(p, axis=-1, keepdims=True)       # exact softmax divide
            o_h = jax.lax.dot_general(
                p, v, (((2,), (1,)), ((0,), (0,))),
                preferred_element_type=jnp.float32)          # (B, S, hd)
            # fold this head straight into the output projection (no concat):
            part = jnp.dot(o_h.reshape(BS, hd),
                           w_out[h * hd:(h + 1) * hd, :],    # sublane-aligned slice
                           preferred_element_type=jnp.float32)
            ctx = part if ctx is None else ctx + part

        attn = ctx + out_b_ref[l]                            # (B*S, D)

        # TODO(synk): dropout omitted (eval-mode identity)
        h1 = _layernorm(x + attn, ln1_g_ref[l], ln1_b_ref[l])

        # ---- feed-forward (ReLU) ---------------------------------------------
        ff = jnp.dot(h1, ff1_w_ref[l],
                     preferred_element_type=jnp.float32) + ff1_b_ref[l]
        ff = jnp.maximum(ff, 0.0)
        ff = jnp.dot(ff, ff2_w_ref[l],
                     preferred_element_type=jnp.float32) + ff2_b_ref[l]
        x = _layernorm(h1 + ff, ln2_g_ref[l], ln2_b_ref[l])  # carry to next layer

    # ---- final decoder projection (lane-dense, vocab padded to 128) ---------
    logits_ref[...] = (
        jnp.dot(x, dec_w_ref[...], preferred_element_type=jnp.float32)
        + dec_b_ref[...]
    ).astype(logits_ref.dtype)


def fused_forward(xb, params, *, nhead, batch, seq):
    """xb: (B*S, D) rows ordered batch-major. Returns padded logits (B*S, Vpad)."""
    BS, D = xb.shape
    L = params["in_w"].shape[0]
    VP = params["dec_w"].shape[-1]

    kernel = functools.partial(
        _fused_kernel, num_layers=L, nhead=nhead, batch=batch, seq=seq)

    vmem = pl.BlockSpec(memory_space=pltpu.MemorySpace.VMEM)  # full array, in VMEM
    n_inputs = 15

    return pl.pallas_call(
        kernel,
        out_shape=jax.ShapeDtypeStruct((BS, VP), jnp.float32),
        in_specs=[vmem] * n_inputs,
        out_specs=vmem,
        # No grid: one invocation, one DMA per array, zero per-step overhead.
    )(xb,
      params["in_w"], params["in_b"],
      params["out_w"], params["out_b"],
      params["ff1_w"], params["ff1_b"],
      params["ff2_w"], params["ff2_b"],
      params["ln1_g"], params["ln1_b"],
      params["ln2_g"], params["ln2_b"],
      params["dec_w"], params["dec_b"])


# ----------------------------------------------------------------------------
# Parameter init (layer weights pre-stacked, q-scale folded, padded decoder)
# ----------------------------------------------------------------------------
def make_positional_encoding(max_len, d_model):
    position = jnp.arange(0, max_len, dtype=jnp.float32)[:, None]
    div_term = jnp.exp(
        jnp.arange(0, d_model, 2, dtype=jnp.float32) * -(math.log(10000.0) / d_model)
    )
    pe = jnp.zeros((max_len, d_model), dtype=jnp.float32)
    pe = pe.at[:, 0::2].set(jnp.sin(position * div_term))
    pe = pe.at[:, 1::2].set(jnp.cos(position * div_term))
    return pe  # (max_len, d_model)


def init_params(key, vocab_size, d_model, nhead, num_layers, dim_ff, max_len=64):
    keys = jax.random.split(key, 3 + num_layers)
    params = {"vocab_size": vocab_size}
    params["embed"] = jax.random.normal(keys[0], (vocab_size, d_model), jnp.float32)
    params["pe"] = make_positional_encoding(max_len, d_model)

    # decoder, padded to a multiple of 128 output columns (unmasked full-lane
    # stores); pad region stays exactly zero and is sliced off in the wrapper.
    vpad = ((vocab_size + 127) // 128) * 128
    dec_w = 0.05 * jax.random.normal(keys[1], (d_model, vocab_size), jnp.float32)
    dec_b = 0.01 * jax.random.normal(keys[2], (vocab_size,), jnp.float32)
    params["dec_w"] = jnp.pad(dec_w, ((0, 0), (0, vpad - vocab_size)))
    params["dec_b"] = jnp.pad(dec_b, (0, vpad - vocab_size)).reshape(1, vpad)

    scale = 1.0 / math.sqrt(d_model // nhead)   # folded into Q weights/bias

    acc = {n: [] for n in ["in_w", "in_b", "out_w", "out_b",
                           "ff1_w", "ff1_b", "ff2_w", "ff2_b",
                           "ln1_g", "ln1_b", "ln2_g", "ln2_b"]}
    for li in range(num_layers):
        lk = jax.random.split(keys[3 + li], 8)
        # weights stored pre-transposed: (in_features, out_features), q|k|v packed
        in_w = 0.05 * jax.random.normal(lk[0], (d_model, 3 * d_model), jnp.float32)
        in_b = 0.01 * jax.random.normal(lk[1], (1, 3 * d_model), jnp.float32)
        in_w = in_w.at[:, :d_model].multiply(scale)   # fold 1/sqrt(hd) into Q
        in_b = in_b.at[:, :d_model].multiply(scale)
        acc["in_w"].append(in_w)
        acc["in_b"].append(in_b)
        acc["out_w"].append(0.05 * jax.random.normal(lk[2], (d_model, d_model), jnp.float32))
        acc["out_b"].append(0.01 * jax.random.normal(lk[3], (1, d_model), jnp.float32))
        acc["ff1_w"].append(0.05 * jax.random.normal(lk[4], (d_model, dim_ff), jnp.float32))
        acc["ff1_b"].append(0.01 * jax.random.normal(lk[5], (1, dim_ff), jnp.float32))
        acc["ff2_w"].append(0.05 * jax.random.normal(lk[6], (dim_ff, d_model), jnp.float32))
        acc["ff2_b"].append(0.01 * jax.random.normal(lk[7], (1, d_model), jnp.float32))
        acc["ln1_g"].append(jnp.ones((1, d_model), jnp.float32))
        acc["ln1_b"].append(jnp.zeros((1, d_model), jnp.float32))
        acc["ln2_g"].append(jnp.ones((1, d_model), jnp.float32))
        acc["ln2_b"].append(jnp.zeros((1, d_model), jnp.float32))
    for name, vals in acc.items():
        params[name] = jnp.stack(vals, axis=0)
    return params


# ----------------------------------------------------------------------------
# Forward: embedding + positional encoding in plain JAX, everything else fused
# ----------------------------------------------------------------------------
def transformer_forward(params, src, nhead):
    S, B = src.shape
    D = params["embed"].shape[1]
    V = params["vocab_size"]

    x = params["embed"][src] * math.sqrt(D)                 # (S, B, D)
    # reproduce torch code exactly: pe[:, :x.size(1), :] == pe indexed by batch dim
    x = x + params["pe"][:B][None, :, :]

    # batch-major rows so each sequence is contiguous inside the kernel
    xb = jnp.transpose(x, (1, 0, 2)).reshape(B * S, D)      # (B*S, D)

    logits_pad = fused_forward(xb, params, nhead=nhead, batch=B, seq=S)  # (B*S, Vpad)
    logits = logits_pad[:, :V].reshape(B, S, V)
    return jnp.transpose(logits, (1, 0, 2))                 # (S, B, vocab)


# ----------------------------------------------------------------------------
if __name__ == "__main__":
    VOCAB = 100
    D_MODEL = 32
    NHEAD = 4
    NUM_LAYERS = 2
    DIM_FF = 64
    S, B = 8, 2  # (seq_len, batch) — batch_first=False convention

    key = jax.random.PRNGKey(0)
    pkey, dkey = jax.random.split(key)
    params = init_params(pkey, VOCAB, D_MODEL, NHEAD, NUM_LAYERS, DIM_FF, max_len=64)

    src = jax.random.randint(dkey, (S, B), 0, VOCAB, dtype=jnp.int32)

    out = transformer_forward(params, src, NHEAD)
    out = jax.block_until_ready(out)
    assert out.shape == (S, B, VOCAB), out.shape
    assert jnp.all(jnp.isfinite(out))
    print("KERNEL_OK")
</pallas_src>

<mosaic_0001>
module attributes {stable_mosaic.version = 11 : i64} {
  func.func @_fused_kernel(%arg0: memref<16x32xf32, #tpu.memory_space<vmem>>, %arg1: memref<2x32x96xf32, #tpu.memory_space<vmem>>, %arg2: memref<2x1x96xf32, #tpu.memory_space<vmem>>, %arg3: memref<2x32x32xf32, #tpu.memory_space<vmem>>, %arg4: memref<2x1x32xf32, #tpu.memory_space<vmem>>, %arg5: memref<2x32x64xf32, #tpu.memory_space<vmem>>, %arg6: memref<2x1x64xf32, #tpu.memory_space<vmem>>, %arg7: memref<2x64x32xf32, #tpu.memory_space<vmem>>, %arg8: memref<2x1x32xf32, #tpu.memory_space<vmem>>, %arg9: memref<2x1x32xf32, #tpu.memory_space<vmem>>, %arg10: memref<2x1x32xf32, #tpu.memory_space<vmem>>, %arg11: memref<2x1x32xf32, #tpu.memory_space<vmem>>, %arg12: memref<2x1x32xf32, #tpu.memory_space<vmem>>, %arg13: memref<32x128xf32, #tpu.memory_space<vmem>>, %arg14: memref<1x128xf32, #tpu.memory_space<vmem>>, %arg15: memref<16x128xf32, #tpu.memory_space<vmem>>) attributes {dimension_semantics = [], scalar_prefetch = 0 : i64, scratch_operands = 0 : i64, tpu.core_type = #tpu.core_type<tc>} {
    %c0 = arith.constant 0 : index
    %c0_0 = arith.constant 0 : index
    %0 = vector.load %arg0[%c0, %c0_0] : memref<16x32xf32, #tpu.memory_space<vmem>>, vector<16x32xf32>
    %c0_1 = arith.constant 0 : index
    %c0_2 = arith.constant 0 : index
    %c0_3 = arith.constant 0 : index
    %1 = vector.load %arg1[%c0_1, %c0_2, %c0_3] : memref<2x32x96xf32, #tpu.memory_space<vmem>>, vector<1x32x96xf32>
    %2 = vector.shape_cast %1 : vector<1x32x96xf32> to vector<32x96xf32>
    %c0_4 = arith.constant 0 : index
    %c0_5 = arith.constant 0 : index
    %c0_6 = arith.constant 0 : index
    %3 = vector.load %arg2[%c0_4, %c0_5, %c0_6] : memref<2x1x96xf32, #tpu.memory_space<vmem>>, vector<1x1x96xf32>
    %4 = vector.shape_cast %3 : vector<1x1x96xf32> to vector<1x96xf32>
    %c0_7 = arith.constant 0 : index
    %c0_8 = arith.constant 0 : index
    %c0_9 = arith.constant 0 : index
    %5 = vector.load %arg3[%c0_7, %c0_8, %c0_9] : memref<2x32x32xf32, #tpu.memory_space<vmem>>, vector<1x32x32xf32>
    %6 = vector.shape_cast %5 : vector<1x32x32xf32> to vector<32x32xf32>
    %cst = arith.constant dense<0.000000e+00> : vector<16x96xf32>
    %7 = tpu.matmul %0, %2, %cst {dimension_numbers = #tpu.dot_dimension_numbers<[1], [0], [0], [1], [0, 0, 1, 1], [], []>} : vector<16x32xf32>, vector<32x96xf32>, vector<16x96xf32> -> vector<16x96xf32>
    %8 = vector.broadcast %4 : vector<1x96xf32> to vector<16x96xf32>
    %9 = arith.addf %7, %8 : vector<16x96xf32>
    %10 = vector.shape_cast %9 : vector<16x96xf32> to vector<2x8x96xf32>
    %11 = vector.extract_strided_slice %10 {offsets = [0, 0, 0], sizes = [2, 8, 8], strides = [1, 1, 1]} : vector<2x8x96xf32> to vector<2x8x8xf32>
    %12 = vector.extract_strided_slice %10 {offsets = [0, 0, 32], sizes = [2, 8, 8], strides = [1, 1, 1]} : vector<2x8x96xf32> to vector<2x8x8xf32>
    %13 = vector.extract_strided_slice %10 {offsets = [0, 0, 64], sizes = [2, 8, 8], strides = [1, 1, 1]} : vector<2x8x96xf32> to vector<2x8x8xf32>
    %cst_10 = arith.constant dense<0.000000e+00> : vector<2x8x8xf32>
    %14 = tpu.matmul %11, %12, %cst_10 {dimension_numbers = #tpu.dot_dimension_numbers<[2], [2], [1], [1], [0, 0, 0, 1, 1, 1], [0], [0]>} : vector<2x8x8xf32>, vector<2x8x8xf32>, vector<2x8x8xf32> -> vector<2x8x8xf32>
    %cst_11 = arith.constant dense<0xFF800000> : vector<2x8xf32>
    %15 = vector.multi_reduction <maximumf>, %14, %cst_11 [2] : vector<2x8x8xf32> to vector<2x8xf32>
    %16 = vector.shape_cast %15 : vector<2x8xf32> to vector<2x8x1xf32>
    %17 = vector.broadcast %16 : vector<2x8x1xf32> to vector<2x8x8xf32>
    %18 = arith.subf %14, %17 : vector<2x8x8xf32>
    %19 = math.exp %18 : vector<2x8x8xf32>
    %cst_12 = arith.constant dense<0.000000e+00> : vector<2x8xf32>
    %20 = vector.multi_reduction <add>, %19, %cst_12 [2] : vector<2x8x8xf32> to vector<2x8xf32>
    %21 = vector.shape_cast %20 : vector<2x8xf32> to vector<2x8x1xf32>
    %22 = vector.broadcast %21 : vector<2x8x1xf32> to vector<2x8x8xf32>
    %23 = arith.divf %19, %22 : vector<2x8x8xf32>
    %cst_13 = arith.constant dense<0.000000e+00> : vector<2x8x8xf32>
    %24 = tpu.matmul %23, %13, %cst_13 {dimension_numbers = #tpu.dot_dimension_numbers<[2], [1], [1], [2], [0, 0, 0, 1, 1, 2], [0], [0]>} : vector<2x8x8xf32>, vector<2x8x8xf32>, vector<2x8x8xf32> -> vector<2x8x8xf32>
    %25 = vector.shape_cast %24 : vector<2x8x8xf32> to vector<16x8xf32>
    %26 = vector.extract_strided_slice %6 {offsets = [0, 0], sizes = [8, 32], strides = [1, 1]} : vector<32x32xf32> to vector<8x32xf32>
    %cst_14 = arith.constant dense<0.000000e+00> : vector<16x32xf32>
    %27 = tpu.matmul %25, %26, %cst_14 {dimension_numbers = #tpu.dot_dimension_numbers<[1], [0], [0], [1], [0, 0, 1, 1], [], []>} : vector<16x8xf32>, vector<8x32xf32>, vector<16x32xf32> -> vector<16x32xf32>
    %28 = vector.extract_strided_slice %10 {offsets = [0, 0, 8], sizes = [2, 8, 8], strides = [1, 1, 1]} : vector<2x8x96xf32> to vector<2x8x8xf32>
    %29 = vector.extract_strided_slice %10 {offsets = [0, 0, 40], sizes = [2, 8, 8], strides = [1, 1, 1]} : vector<2x8x96xf32> to vector<2x8x8xf32>
    %30 = vector.extract_strided_slice %10 {offsets = [0, 0, 72], sizes = [2, 8, 8], strides = [1, 1, 1]} : vector<2x8x96xf32> to vector<2x8x8xf32>
    %cst_15 = arith.constant dense<0.000000e+00> : vector<2x8x8xf32>
    %31 = tpu.matmul %28, %29, %cst_15 {dimension_numbers = #tpu.dot_dimension_numbers<[2], [2], [1], [1], [0, 0, 0, 1, 1, 1], [0], [0]>} : vector<2x8x8xf32>, vector<2x8x8xf32>, vector<2x8x8xf32> -> vector<2x8x8xf32>
    %cst_16 = arith.constant dense<0xFF800000> : vector<2x8xf32>
    %32 = vector.multi_reduction <maximumf>, %31, %cst_16 [2] : vector<2x8x8xf32> to vector<2x8xf32>
    %33 = vector.shape_cast %32 : vector<2x8xf32> to vector<2x8x1xf32>
    %34 = vector.broadcast %33 : vector<2x8x1xf32> to vector<2x8x8xf32>
    %35 = arith.subf %31, %34 : vector<2x8x8xf32>
    %36 = math.exp %35 : vector<2x8x8xf32>
    %cst_17 = arith.constant dense<0.000000e+00> : vector<2x8xf32>
    %37 = vector.multi_reduction <add>, %36, %cst_17 [2] : vector<2x8x8xf32> to vector<2x8xf32>
    %38 = vector.shape_cast %37 : vector<2x8xf32> to vector<2x8x1xf32>
    %39 = vector.broadcast %38 : vector<2x8x1xf32> to vector<2x8x8xf32>
    %40 = arith.divf %36, %39 : vector<2x8x8xf32>
    %cst_18 = arith.constant dense<0.000000e+00> : vector<2x8x8xf32>
    %41 = tpu.matmul %40, %30, %cst_18 {dimension_numbers = #tpu.dot_dimension_numbers<[2], [1], [1], [2], [0, 0, 0, 1, 1, 2], [0], [0]>} : vector<2x8x8xf32>, vector<2x8x8xf32>, vector<2x8x8xf32> -> vector<2x8x8xf32>
    %42 = vector.shape_cast %41 : vector<2x8x8xf32> to vector<16x8xf32>
    %43 = vector.extract_strided_slice %6 {offsets = [8, 0], sizes = [8, 32], strides = [1, 1]} : vector<32x32xf32> to vector<8x32xf32>
    %cst_19 = arith.constant dense<0.000000e+00> : vector<16x32xf32>
    %44 = tpu.matmul %42, %43, %cst_19 {dimension_numbers = #tpu.dot_dimension_numbers<[1], [0], [0], [1], [0, 0, 1, 1], [], []>} : vector<16x8xf32>, vector<8x32xf32>, vector<16x32xf32> -> vector<16x32xf32>
    %45 = arith.addf %27, %44 : vector<16x32xf32>
    %46 = vector.extract_strided_slice %10 {offsets = [0, 0, 16], sizes = [2, 8, 8], strides = [1, 1, 1]} : vector<2x8x96xf32> to vector<2x8x8xf32>
    %47 = vector.extract_strided_slice %10 {offsets = [0, 0, 48], sizes = [2, 8, 8], strides = [1, 1, 1]} : vector<2x8x96xf32> to vector<2x8x8xf32>
    %48 = vector.extract_strided_slice %10 {offsets = [0, 0, 80], sizes = [2, 8, 8], strides = [1, 1, 1]} : vector<2x8x96xf32> to vector<2x8x8xf32>
    %cst_20 = arith.constant dense<0.000000e+00> : vector<2x8x8xf32>
    %49 = tpu.matmul %46, %47, %cst_20 {dimension_numbers = #tpu.dot_dimension_numbers<[2], [2], [1], [1], [0, 0, 0, 1, 1, 1], [0], [0]>} : vector<2x8x8xf32>, vector<2x8x8xf32>, vector<2x8x8xf32> -> vector<2x8x8xf32>
    %cst_21 = arith.constant dense<0xFF800000> : vector<2x8xf32>
    %50 = vector.multi_reduction <maximumf>, %49, %cst_21 [2] : vector<2x8x8xf32> to vector<2x8xf32>
    %51 = vector.shape_cast %50 : vector<2x8xf32> to vector<2x8x1xf32>
    %52 = vector.broadcast %51 : vector<2x8x1xf32> to vector<2x8x8xf32>
    %53 = arith.subf %49, %52 : vector<2x8x8xf32>
    %54 = math.exp %53 : vector<2x8x8xf32>
    %cst_22 = arith.constant dense<0.000000e+00> : vector<2x8xf32>
    %55 = vector.multi_reduction <add>, %54, %cst_22 [2] : vector<2x8x8xf32> to vector<2x8xf32>
    %56 = vector.shape_cast %55 : vector<2x8xf32> to vector<2x8x1xf32>
    %57 = vector.broadcast %56 : vector<2x8x1xf32> to vector<2x8x8xf32>
    %58 = arith.divf %54, %57 : vector<2x8x8xf32>
    %cst_23 = arith.constant dense<0.000000e+00> : vector<2x8x8xf32>
    %59 = tpu.matmul %58, %48, %cst_23 {dimension_numbers = #tpu.dot_dimension_numbers<[2], [1], [1], [2], [0, 0, 0, 1, 1, 2], [0], [0]>} : vector<2x8x8xf32>, vector<2x8x8xf32>, vector<2x8x8xf32> -> vector<2x8x8xf32>
    %60 = vector.shape_cast %59 : vector<2x8x8xf32> to vector<16x8xf32>
    %61 = vector.extract_strided_slice %6 {offsets = [16, 0], sizes = [8, 32], strides = [1, 1]} : vector<32x32xf32> to vector<8x32xf32>
    %cst_24 = arith.constant dense<0.000000e+00> : vector<16x32xf32>
    %62 = tpu.matmul %60, %61, %cst_24 {dimension_numbers = #tpu.dot_dimension_numbers<[1], [0], [0], [1], [0, 0, 1, 1], [], []>} : vector<16x8xf32>, vector<8x32xf32>, vector<16x32xf32> -> vector<16x32xf32>
    %63 = arith.addf %45, %62 : vector<16x32xf32>
    %64 = vector.extract_strided_slice %10 {offsets = [0, 0, 24], sizes = [2, 8, 8], strides = [1, 1, 1]} : vector<2x8x96xf32> to vector<2x8x8xf32>
    %65 = vector.extract_strided_slice %10 {offsets = [0, 0, 56], sizes = [2, 8, 8], strides = [1, 1, 1]} : vector<2x8x96xf32> to vector<2x8x8xf32>
    %66 = vector.extract_strided_slice %10 {offsets = [0, 0, 88], sizes = [2, 8, 8], strides = [1, 1, 1]} : vector<2x8x96xf32> to vector<2x8x8xf32>
    %cst_25 = arith.constant dense<0.000000e+00> : vector<2x8x8xf32>
    %67 = tpu.matmul %64, %65, %cst_25 {dimension_numbers = #tpu.dot_dimension_numbers<[2], [2], [1], [1], [0, 0, 0, 1, 1, 1], [0], [0]>} : vector<2x8x8xf32>, vector<2x8x8xf32>, vector<2x8x8xf32> -> vector<2x8x8xf32>
    %cst_26 = arith.constant dense<0xFF800000> : vector<2x8xf32>
    %68 = vector.multi_reduction <maximumf>, %67, %cst_26 [2] : vector<2x8x8xf32> to vector<2x8xf32>
    %69 = vector.shape_cast %68 : vector<2x8xf32> to vector<2x8x1xf32>
    %70 = vector.broadcast %69 : vector<2x8x1xf32> to vector<2x8x8xf32>
    %71 = arith.subf %67, %70 : vector<2x8x8xf32>
    %72 = math.exp %71 : vector<2x8x8xf32>
    %cst_27 = arith.constant dense<0.000000e+00> : vector<2x8xf32>
    %73 = vector.multi_reduction <add>, %72, %cst_27 [2] : vector<2x8x8xf32> to vector<2x8xf32>
    %74 = vector.shape_cast %73 : vector<2x8xf32> to vector<2x8x1xf32>
    %75 = vector.broadcast %74 : vector<2x8x1xf32> to vector<2x8x8xf32>
    %76 = arith.divf %72, %75 : vector<2x8x8xf32>
    %cst_28 = arith.constant dense<0.000000e+00> : vector<2x8x8xf32>
    %77 = tpu.matmul %76, %66, %cst_28 {dimension_numbers = #tpu.dot_dimension_numbers<[2], [1], [1], [2], [0, 0, 0, 1, 1, 2], [0], [0]>} : vector<2x8x8xf32>, vector<2x8x8xf32>, vector<2x8x8xf32> -> vector<2x8x8xf32>
    %78 = vector.shape_cast %77 : vector<2x8x8xf32> to vector<16x8xf32>
    %79 = vector.extract_strided_slice %6 {offsets = [24, 0], sizes = [8, 32], strides = [1, 1]} : vector<32x32xf32> to vector<8x32xf32>
    %cst_29 = arith.constant dense<0.000000e+00> : vector<16x32xf32>
    %80 = tpu.matmul %78, %79, %cst_29 {dimension_numbers = #tpu.dot_dimension_numbers<[1], [0], [0], [1], [0, 0, 1, 1], [], []>} : vector<16x8xf32>, vector<8x32xf32>, vector<16x32xf32> -> vector<16x32xf32>
    %81 = arith.addf %63, %80 : vector<16x32xf32>
    %c0_30 = arith.constant 0 : index
    %c0_31 = arith.constant 0 : index
    %c0_32 = arith.constant 0 : index
    %82 = vector.load %arg4[%c0_30, %c0_31, %c0_32] : memref<2x1x32xf32, #tpu.memory_space<vmem>>, vector<1x1x32xf32>
    %83 = vector.shape_cast %82 : vector<1x1x32xf32> to vector<1x32xf32>
    %84 = vector.broadcast %83 : vector<1x32xf32> to vector<16x32xf32>
    %85 = arith.addf %81, %84 : vector<16x32xf32>
    %86 = arith.addf %0, %85 : vector<16x32xf32>
    %c0_33 = arith.constant 0 : index
    %c0_34 = arith.constant 0 : index
    %c0_35 = arith.constant 0 : index
    %87 = vector.load %arg9[%c0_33, %c0_34, %c0_35] : memref<2x1x32xf32, #tpu.memory_space<vmem>>, vector<1x1x32xf32>
    %88 = vector.shape_cast %87 : vector<1x1x32xf32> to vector<1x32xf32>
    %c0_36 = arith.constant 0 : index
    %c0_37 = arith.constant 0 : index
    %c0_38 = arith.constant 0 : index
    %89 = vector.load %arg10[%c0_36, %c0_37, %c0_38] : memref<2x1x32xf32, #tpu.memory_space<vmem>>, vector<1x1x32xf32>
    %90 = vector.shape_cast %89 : vector<1x1x32xf32> to vector<1x32xf32>
    %cst_39 = arith.constant dense<0.000000e+00> : vector<16xf32>
    %91 = vector.multi_reduction <add>, %86, %cst_39 [1] : vector<16x32xf32> to vector<16xf32>
    %92 = vector.shape_cast %91 : vector<16xf32> to vector<16x1xf32>
    %cst_40 = arith.constant 3.200000e+01 : f32
    %93 = vector.broadcast %cst_40 : f32 to vector<16x1xf32>
    %94 = arith.divf %92, %93 : vector<16x1xf32>
    %95 = vector.broadcast %94 : vector<16x1xf32> to vector<16x32xf32>
    %96 = arith.subf %86, %95 : vector<16x32xf32>
    %97 = arith.mulf %96, %96 : vector<16x32xf32>
    %cst_41 = arith.constant dense<0.000000e+00> : vector<16xf32>
    %98 = vector.multi_reduction <add>, %97, %cst_41 [1] : vector<16x32xf32> to vector<16xf32>
    %99 = vector.shape_cast %98 : vector<16xf32> to vector<16x1xf32>
    %cst_42 = arith.constant 3.200000e+01 : f32
    %100 = vector.broadcast %cst_42 : f32 to vector<16x1xf32>
    %101 = arith.divf %99, %100 : vector<16x1xf32>
    %102 = vector.broadcast %94 : vector<16x1xf32> to vector<16x32xf32>
    %103 = arith.subf %86, %102 : vector<16x32xf32>
    %cst_43 = arith.constant 9.99999974E-6 : f32
    %104 = vector.broadcast %cst_43 : f32 to vector<16x1xf32>
    %105 = arith.addf %101, %104 : vector<16x1xf32>
    %106 = math.rsqrt %105 : vector<16x1xf32>
    %107 = vector.broadcast %106 : vector<16x1xf32> to vector<16x32xf32>
    %108 = arith.mulf %103, %107 : vector<16x32xf32>
    %109 = vector.broadcast %88 : vector<1x32xf32> to vector<16x32xf32>
    %110 = arith.mulf %108, %109 : vector<16x32xf32>
    %111 = vector.broadcast %90 : vector<1x32xf32> to vector<16x32xf32>
    %112 = arith.addf %110, %111 : vector<16x32xf32>
    %c0_44 = arith.constant 0 : index
    %c0_45 = arith.constant 0 : index
    %c0_46 = arith.constant 0 : index
    %113 = vector.load %arg5[%c0_44, %c0_45, %c0_46] : memref<2x32x64xf32, #tpu.memory_space<vmem>>, vector<1x32x64xf32>
    %114 = vector.shape_cast %113 : vector<1x32x64xf32> to vector<32x64xf32>
    %cst_47 = arith.constant dense<0.000000e+00> : vector<16x64xf32>
    %115 = tpu.matmul %112, %114, %cst_47 {dimension_numbers = #tpu.dot_dimension_numbers<[1], [0], [0], [1], [0, 0, 1, 1], [], []>} : vector<16x32xf32>, vector<32x64xf32>, vector<16x64xf32> -> vector<16x64xf32>
    %c0_48 = arith.constant 0 : index
    %c0_49 = arith.constant 0 : index
    %c0_50 = arith.constant 0 : index
    %116 = vector.load %arg6[%c0_48, %c0_49, %c0_50] : memref<2x1x64xf32, #tpu.memory_space<vmem>>, vector<1x1x64xf32>
    %117 = vector.shape_cast %116 : vector<1x1x64xf32> to vector<1x64xf32>
    %118 = vector.broadcast %117 : vector<1x64xf32> to vector<16x64xf32>
    %119 = arith.addf %115, %118 : vector<16x64xf32>
    %cst_51 = arith.constant 0.000000e+00 : f32
    %120 = vector.broadcast %cst_51 : f32 to vector<16x64xf32>
    %121 = arith.maximumf %119, %120 : vector<16x64xf32>
    %c0_52 = arith.constant 0 : index
    %c0_53 = arith.constant 0 : index
    %c0_54 = arith.constant 0 : index
    %122 = vector.load %arg7[%c0_52, %c0_53, %c0_54] : memref<2x64x32xf32, #tpu.memory_space<vmem>>, vector<1x64x32xf32>
    %123 = vector.shape_cast %122 : vector<1x64x32xf32> to vector<64x32xf32>
    %cst_55 = arith.constant dense<0.000000e+00> : vector<16x32xf32>
    %124 = tpu.matmul %121, %123, %cst_55 {dimension_numbers = #tpu.dot_dimension_numbers<[1], [0], [0], [1], [0, 0, 1, 1], [], []>} : vector<16x64xf32>, vector<64x32xf32>, vector<16x32xf32> -> vector<16x32xf32>
    %c0_56 = arith.constant 0 : index
    %c0_57 = arith.constant 0 : index
    %c0_58 = arith.constant 0 : index
    %125 = vector.load %arg8[%c0_56, %c0_57, %c0_58] : memref<2x1x32xf32, #tpu.memory_space<vmem>>, vector<1x1x32xf32>
    %126 = vector.shape_cast %125 : vector<1x1x32xf32> to vector<1x32xf32>
    %127 = vector.broadcast %126 : vector<1x32xf32> to vector<16x32xf32>
    %128 = arith.addf %124, %127 : vector<16x32xf32>
    %129 = arith.addf %112, %128 : vector<16x32xf32>
    %c0_59 = arith.constant 0 : index
    %c0_60 = arith.constant 0 : index
    %c0_61 = arith.constant 0 : index
    %130 = vector.load %arg11[%c0_59, %c0_60, %c0_61] : memref<2x1x32xf32, #tpu.memory_space<vmem>>, vector<1x1x32xf32>
    %131 = vector.shape_cast %130 : vector<1x1x32xf32> to vector<1x32xf32>
    %c0_62 = arith.constant 0 : index
    %c0_63 = arith.constant 0 : index
    %c0_64 = arith.constant 0 : index
    %132 = vector.load %arg12[%c0_62, %c0_63, %c0_64] : memref<2x1x32xf32, #tpu.memory_space<vmem>>, vector<1x1x32xf32>
    %133 = vector.shape_cast %132 : vector<1x1x32xf32> to vector<1x32xf32>
    %cst_65 = arith.constant dense<0.000000e+00> : vector<16xf32>
    %134 = vector.multi_reduction <add>, %129, %cst_65 [1] : vector<16x32xf32> to vector<16xf32>
    %135 = vector.shape_cast %134 : vector<16xf32> to vector<16x1xf32>
    %cst_66 = arith.constant 3.200000e+01 : f32
    %136 = vector.broadcast %cst_66 : f32 to vector<16x1xf32>
    %137 = arith.divf %135, %136 : vector<16x1xf32>
    %138 = vector.broadcast %137 : vector<16x1xf32> to vector<16x32xf32>
    %139 = arith.subf %129, %138 : vector<16x32xf32>
    %140 = arith.mulf %139, %139 : vector<16x32xf32>
    %cst_67 = arith.constant dense<0.000000e+00> : vector<16xf32>
    %141 = vector.multi_reduction <add>, %140, %cst_67 [1] : vector<16x32xf32> to vector<16xf32>
    %142 = vector.shape_cast %141 : vector<16xf32> to vector<16x1xf32>
    %cst_68 = arith.constant 3.200000e+01 : f32
    %143 = vector.broadcast %cst_68 : f32 to vector<16x1xf32>
    %144 = arith.divf %142, %143 : vector<16x1xf32>
    %145 = vector.broadcast %137 : vector<16x1xf32> to vector<16x32xf32>
    %146 = arith.subf %129, %145 : vector<16x32xf32>
    %cst_69 = arith.constant 9.99999974E-6 : f32
    %147 = vector.broadcast %cst_69 : f32 to vector<16x1xf32>
    %148 = arith.addf %144, %147 : vector<16x1xf32>
    %149 = math.rsqrt %148 : vector<16x1xf32>
    %150 = vector.broadcast %149 : vector<16x1xf32> to vector<16x32xf32>
    %151 = arith.mulf %146, %150 : vector<16x32xf32>
    %152 = vector.broadcast %131 : vector<1x32xf32> to vector<16x32xf32>
    %153 = arith.mulf %151, %152 : vector<16x32xf32>
    %154 = vector.broadcast %133 : vector<1x32xf32> to vector<16x32xf32>
    %155 = arith.addf %153, %154 : vector<16x32xf32>
    %c1 = arith.constant 1 : index
    %c0_70 = arith.constant 0 : index
    %c0_71 = arith.constant 0 : index
    %156 = vector.load %arg1[%c1, %c0_70, %c0_71] : memref<2x32x96xf32, #tpu.memory_space<vmem>>, vector<1x32x96xf32>
    %157 = vector.shape_cast %156 : vector<1x32x96xf32> to vector<32x96xf32>
    %c1_72 = arith.constant 1 : index
    %c0_73 = arith.constant 0 : index
    %c0_74 = arith.constant 0 : index
    %158 = vector.load %arg2[%c1_72, %c0_73, %c0_74] : memref<2x1x96xf32, #tpu.memory_space<vmem>>, vector<1x1x96xf32>
    %159 = vector.shape_cast %158 : vector<1x1x96xf32> to vector<1x96xf32>
    %c1_75 = arith.constant 1 : index
    %c0_76 = arith.constant 0 : index
    %c0_77 = arith.constant 0 : index
    %160 = vector.load %arg3[%c1_75, %c0_76, %c0_77] : memref<2x32x32xf32, #tpu.memory_space<vmem>>, vector<1x32x32xf32>
    %161 = vector.shape_cast %160 : vector<1x32x32xf32> to vector<32x32xf32>
    %cst_78 = arith.constant dense<0.000000e+00> : vector<16x96xf32>
    %162 = tpu.matmul %155, %157, %cst_78 {dimension_numbers = #tpu.dot_dimension_numbers<[1], [0], [0], [1], [0, 0, 1, 1], [], []>} : vector<16x32xf32>, vector<32x96xf32>, vector<16x96xf32> -> vector<16x96xf32>
    %163 = vector.broadcast %159 : vector<1x96xf32> to vector<16x96xf32>
    %164 = arith.addf %162, %163 : vector<16x96xf32>
    %165 = vector.shape_cast %164 : vector<16x96xf32> to vector<2x8x96xf32>
    %166 = vector.extract_strided_slice %165 {offsets = [0, 0, 0], sizes = [2, 8, 8], strides = [1, 1, 1]} : vector<2x8x96xf32> to vector<2x8x8xf32>
    %167 = vector.extract_strided_slice %165 {offsets = [0, 0, 32], sizes = [2, 8, 8], strides = [1, 1, 1]} : vector<2x8x96xf32> to vector<2x8x8xf32>
    %168 = vector.extract_strided_slice %165 {offsets = [0, 0, 64], sizes = [2, 8, 8], strides = [1, 1, 1]} : vector<2x8x96xf32> to vector<2x8x8xf32>
    %cst_79 = arith.constant dense<0.000000e+00> : vector<2x8x8xf32>
    %169 = tpu.matmul %166, %167, %cst_79 {dimension_numbers = #tpu.dot_dimension_numbers<[2], [2], [1], [1], [0, 0, 0, 1, 1, 1], [0], [0]>} : vector<2x8x8xf32>, vector<2x8x8xf32>, vector<2x8x8xf32> -> vector<2x8x8xf32>
    %cst_80 = arith.constant dense<0xFF800000> : vector<2x8xf32>
    %170 = vector.multi_reduction <maximumf>, %169, %cst_80 [2] : vector<2x8x8xf32> to vector<2x8xf32>
    %171 = vector.shape_cast %170 : vector<2x8xf32> to vector<2x8x1xf32>
    %172 = vector.broadcast %171 : vector<2x8x1xf32> to vector<2x8x8xf32>
    %173 = arith.subf %169, %172 : vector<2x8x8xf32>
    %174 = math.exp %173 : vector<2x8x8xf32>
    %cst_81 = arith.constant dense<0.000000e+00> : vector<2x8xf32>
    %175 = vector.multi_reduction <add>, %174, %cst_81 [2] : vector<2x8x8xf32> to vector<2x8xf32>
    %176 = vector.shape_cast %175 : vector<2x8xf32> to vector<2x8x1xf32>
    %177 = vector.broadcast %176 : vector<2x8x1xf32> to vector<2x8x8xf32>
    %178 = arith.divf %174, %177 : vector<2x8x8xf32>
    %cst_82 = arith.constant dense<0.000000e+00> : vector<2x8x8xf32>
    %179 = tpu.matmul %178, %168, %cst_82 {dimension_numbers = #tpu.dot_dimension_numbers<[2], [1], [1], [2], [0, 0, 0, 1, 1, 2], [0], [0]>} : vector<2x8x8xf32>, vector<2x8x8xf32>, vector<2x8x8xf32> -> vector<2x8x8xf32>
    %180 = vector.shape_cast %179 : vector<2x8x8xf32> to vector<16x8xf32>
    %181 = vector.extract_strided_slice %161 {offsets = [0, 0], sizes = [8, 32], strides = [1, 1]} : vector<32x32xf32> to vector<8x32xf32>
    %cst_83 = arith.constant dense<0.000000e+00> : vector<16x32xf32>
    %182 = tpu.matmul %180, %181, %cst_83 {dimension_numbers = #tpu.dot_dimension_numbers<[1], [0], [0], [1], [0, 0, 1, 1], [], []>} : vector<16x8xf32>, vector<8x32xf32>, vector<16x32xf32> -> vector<16x32xf32>
    %183 = vector.extract_strided_slice %165 {offsets = [0, 0, 8], sizes = [2, 8, 8], strides = [1, 1, 1]} : vector<2x8x96xf32> to vector<2x8x8xf32>
    %184 = vector.extract_strided_slice %165 {offsets = [0, 0, 40], sizes = [2, 8, 8], strides = [1, 1, 1]} : vector<2x8x96xf32> to vector<2x8x8xf32>
    %185 = vector.extract_strided_slice %165 {offsets = [0, 0, 72], sizes = [2, 8, 8], strides = [1, 1, 1]} : vector<2x8x96xf32> to vector<2x8x8xf32>
    %cst_84 = arith.constant dense<0.000000e+00> : vector<2x8x8xf32>
    %186 = tpu.matmul %183, %184, %cst_84 {dimension_numbers = #tpu.dot_dimension_numbers<[2], [2], [1], [1], [0, 0, 0, 1, 1, 1], [0], [0]>} : vector<2x8x8xf32>, vector<2x8x8xf32>, vector<2x8x8xf32> -> vector<2x8x8xf32>
    %cst_85 = arith.constant dense<0xFF800000> : vector<2x8xf32>
    %187 = vector.multi_reduction <maximumf>, %186, %cst_85 [2] : vector<2x8x8xf32> to vector<2x8xf32>
    %188 = vector.shape_cast %187 : vector<2x8xf32> to vector<2x8x1xf32>
    %189 = vector.broadcast %188 : vector<2x8x1xf32> to vector<2x8x8xf32>
    %190 = arith.subf %186, %189 : vector<2x8x8xf32>
    %191 = math.exp %190 : vector<2x8x8xf32>
    %cst_86 = arith.constant dense<0.000000e+00> : vector<2x8xf32>
    %192 = vector.multi_reduction <add>, %191, %cst_86 [2] : vector<2x8x8xf32> to vector<2x8xf32>
    %193 = vector.shape_cast %192 : vector<2x8xf32> to vector<2x8x1xf32>
    %194 = vector.broadcast %193 : vector<2x8x1xf32> to vector<2x8x8xf32>
    %195 = arith.divf %191, %194 : vector<2x8x8xf32>
    %cst_87 = arith.constant dense<0.000000e+00> : vector<2x8x8xf32>
    %196 = tpu.matmul %195, %185, %cst_87 {dimension_numbers = #tpu.dot_dimension_numbers<[2], [1], [1], [2], [0, 0, 0, 1, 1, 2], [0], [0]>} : vector<2x8x8xf32>, vector<2x8x8xf32>, vector<2x8x8xf32> -> vector<2x8x8xf32>
    %197 = vector.shape_cast %196 : vector<2x8x8xf32> to vector<16x8xf32>
    %198 = vector.extract_strided_slice %161 {offsets = [8, 0], sizes = [8, 32], strides = [1, 1]} : vector<32x32xf32> to vector<8x32xf32>
    %cst_88 = arith.constant dense<0.000000e+00> : vector<16x32xf32>
    %199 = tpu.matmul %197, %198, %cst_88 {dimension_numbers = #tpu.dot_dimension_numbers<[1], [0], [0], [1], [0, 0, 1, 1], [], []>} : vector<16x8xf32>, vector<8x32xf32>, vector<16x32xf32> -> vector<16x32xf32>
    %200 = arith.addf %182, %199 : vector<16x32xf32>
    %201 = vector.extract_strided_slice %165 {offsets = [0, 0, 16], sizes = [2, 8, 8], strides = [1, 1, 1]} : vector<2x8x96xf32> to vector<2x8x8xf32>
    %202 = vector.extract_strided_slice %165 {offsets = [0, 0, 48], sizes = [2, 8, 8], strides = [1, 1, 1]} : vector<2x8x96xf32> to vector<2x8x8xf32>
    %203 = vector.extract_strided_slice %165 {offsets = [0, 0, 80], sizes = [2, 8, 8], strides = [1, 1, 1]} : vector<2x8x96xf32> to vector<2x8x8xf32>
    %cst_89 = arith.constant dense<0.000000e+00> : vector<2x8x8xf32>
    %204 = tpu.matmul %201, %202, %cst_89 {dimension_numbers = #tpu.dot_dimension_numbers<[2], [2], [1], [1], [0, 0, 0, 1, 1, 1], [0], [0]>} : vector<2x8x8xf32>, vector<2x8x8xf32>, vector<2x8x8xf32> -> vector<2x8x8xf32>
    %cst_90 = arith.constant dense<0xFF800000> : vector<2x8xf32>
    %205 = vector.multi_reduction <maximumf>, %204, %cst_90 [2] : vector<2x8x8xf32> to vector<2x8xf32>
    %206 = vector.shape_cast %205 : vector<2x8xf32> to vector<2x8x1xf32>
    %207 = vector.broadcast %206 : vector<2x8x1xf32> to vector<2x8x8xf32>
    %208 = arith.subf %204, %207 : vector<2x8x8xf32>
    %209 = math.exp %208 : vector<2x8x8xf32>
    %cst_91 = arith.constant dense<0.000000e+00> : vector<2x8xf32>
    %210 = vector.multi_reduction <add>, %209, %cst_91 [2] : vector<2x8x8xf32> to vector<2x8xf32>
    %211 = vector.shape_cast %210 : vector<2x8xf32> to vector<2x8x1xf32>
    %212 = vector.broadcast %211 : vector<2x8x1xf32> to vector<2x8x8xf32>
    %213 = arith.divf %209, %212 : vector<2x8x8xf32>
    %cst_92 = arith.constant dense<0.000000e+00> : vector<2x8x8xf32>
    %214 = tpu.matmul %213, %203, %cst_92 {dimension_numbers = #tpu.dot_dimension_numbers<[2], [1], [1], [2], [0, 0, 0, 1, 1, 2], [0], [0]>} : vector<2x8x8xf32>, vector<2x8x8xf32>, vector<2x8x8xf32> -> vector<2x8x8xf32>
    %215 = vector.shape_cast %214 : vector<2x8x8xf32> to vector<16x8xf32>
    %216 = vector.extract_strided_slice %161 {offsets = [16, 0], sizes = [8, 32], strides = [1, 1]} : vector<32x32xf32> to vector<8x32xf32>
    %cst_93 = arith.constant dense<0.000000e+00> : vector<16x32xf32>
    %217 = tpu.matmul %215, %216, %cst_93 {dimension_numbers = #tpu.dot_dimension_numbers<[1], [0], [0], [1], [0, 0, 1, 1], [], []>} : vector<16x8xf32>, vector<8x32xf32>, vector<16x32xf32> -> vector<16x32xf32>
    %218 = arith.addf %200, %217 : vector<16x32xf32>
    %219 = vector.extract_strided_slice %165 {offsets = [0, 0, 24], sizes = [2, 8, 8], strides = [1, 1, 1]} : vector<2x8x96xf32> to vector<2x8x8xf32>
    %220 = vector.extract_strided_slice %165 {offsets = [0, 0, 56], sizes = [2, 8, 8], strides = [1, 1, 1]} : vector<2x8x96xf32> to vector<2x8x8xf32>
    %221 = vector.extract_strided_slice %165 {offsets = [0, 0, 88], sizes = [2, 8, 8], strides = [1, 1, 1]} : vector<2x8x96xf32> to vector<2x8x8xf32>
    %cst_94 = arith.constant dense<0.000000e+00> : vector<2x8x8xf32>
    %222 = tpu.matmul %219, %220, %cst_94 {dimension_numbers = #tpu.dot_dimension_numbers<[2], [2], [1], [1], [0, 0, 0, 1, 1, 1], [0], [0]>} : vector<2x8x8xf32>, vector<2x8x8xf32>, vector<2x8x8xf32> -> vector<2x8x8xf32>
    %cst_95 = arith.constant dense<0xFF800000> : vector<2x8xf32>
    %223 = vector.multi_reduction <maximumf>, %222, %cst_95 [2] : vector<2x8x8xf32> to vector<2x8xf32>
    %224 = vector.shape_cast %223 : vector<2x8xf32> to vector<2x8x1xf32>
    %225 = vector.broadcast %224 : vector<2x8x1xf32> to vector<2x8x8xf32>
    %226 = arith.subf %222, %225 : vector<2x8x8xf32>
    %227 = math.exp %226 : vector<2x8x8xf32>
    %cst_96 = arith.constant dense<0.000000e+00> : vector<2x8xf32>
    %228 = vector.multi_reduction <add>, %227, %cst_96 [2] : vector<2x8x8xf32> to vector<2x8xf32>
    %229 = vector.shape_cast %228 : vector<2x8xf32> to vector<2x8x1xf32>
    %230 = vector.broadcast %229 : vector<2x8x1xf32> to vector<2x8x8xf32>
    %231 = arith.divf %227, %230 : vector<2x8x8xf32>
    %cst_97 = arith.constant dense<0.000000e+00> : vector<2x8x8xf32>
    %232 = tpu.matmul %231, %221, %cst_97 {dimension_numbers = #tpu.dot_dimension_numbers<[2], [1], [1], [2], [0, 0, 0, 1, 1, 2], [0], [0]>} : vector<2x8x8xf32>, vector<2x8x8xf32>, vector<2x8x8xf32> -> vector<2x8x8xf32>
    %233 = vector.shape_cast %232 : vector<2x8x8xf32> to vector<16x8xf32>
    %234 = vector.extract_strided_slice %161 {offsets = [24, 0], sizes = [8, 32], strides = [1, 1]} : vector<32x32xf32> to vector<8x32xf32>
    %cst_98 = arith.constant dense<0.000000e+00> : vector<16x32xf32>
    %235 = tpu.matmul %233, %234, %cst_98 {dimension_numbers = #tpu.dot_dimension_numbers<[1], [0], [0], [1], [0, 0, 1, 1], [], []>} : vector<16x8xf32>, vector<8x32xf32>, vector<16x32xf32> -> vector<16x32xf32>
    %236 = arith.addf %218, %235 : vector<16x32xf32>
    %c1_99 = arith.constant 1 : index
    %c0_100 = arith.constant 0 : index
    %c0_101 = arith.constant 0 : index
    %237 = vector.load %arg4[%c1_99, %c0_100, %c0_101] : memref<2x1x32xf32, #tpu.memory_space<vmem>>, vector<1x1x32xf32>
    %238 = vector.shape_cast %237 : vector<1x1x32xf32> to vector<1x32xf32>
    %239 = vector.broadcast %238 : vector<1x32xf32> to vector<16x32xf32>
    %240 = arith.addf %236, %239 : vector<16x32xf32>
    %241 = arith.addf %155, %240 : vector<16x32xf32>
    %c1_102 = arith.constant 1 : index
    %c0_103 = arith.constant 0 : index
    %c0_104 = arith.constant 0 : index
    %242 = vector.load %arg9[%c1_102, %c0_103, %c0_104] : memref<2x1x32xf32, #tpu.memory_space<vmem>>, vector<1x1x32xf32>
    %243 = vector.shape_cast %242 : vector<1x1x32xf32> to vector<1x32xf32>
    %c1_105 = arith.constant 1 : index
    %c0_106 = arith.constant 0 : index
    %c0_107 = arith.constant 0 : index
    %244 = vector.load %arg10[%c1_105, %c0_106, %c0_107] : memref<2x1x32xf32, #tpu.memory_space<vmem>>, vector<1x1x32xf32>
    %245 = vector.shape_cast %244 : vector<1x1x32xf32> to vector<1x32xf32>
    %cst_108 = arith.constant dense<0.000000e+00> : vector<16xf32>
    %246 = vector.multi_reduction <add>, %241, %cst_108 [1] : vector<16x32xf32> to vector<16xf32>
    %247 = vector.shape_cast %246 : vector<16xf32> to vector<16x1xf32>
    %cst_109 = arith.constant 3.200000e+01 : f32
    %248 = vector.broadcast %cst_109 : f32 to vector<16x1xf32>
    %249 = arith.divf %247, %248 : vector<16x1xf32>
    %250 = vector.broadcast %249 : vector<16x1xf32> to vector<16x32xf32>
    %251 = arith.subf %241, %250 : vector<16x32xf32>
    %252 = arith.mulf %251, %251 : vector<16x32xf32>
    %cst_110 = arith.constant dense<0.000000e+00> : vector<16xf32>
    %253 = vector.multi_reduction <add>, %252, %cst_110 [1] : vector<16x32xf32> to vector<16xf32>
    %254 = vector.shape_cast %253 : vector<16xf32> to vector<16x1xf32>
    %cst_111 = arith.constant 3.200000e+01 : f32
    %255 = vector.broadcast %cst_111 : f32 to vector<16x1xf32>
    %256 = arith.divf %254, %255 : vector<16x1xf32>
    %257 = vector.broadcast %249 : vector<16x1xf32> to vector<16x32xf32>
    %258 = arith.subf %241, %257 : vector<16x32xf32>
    %cst_112 = arith.constant 9.99999974E-6 : f32
    %259 = vector.broadcast %cst_112 : f32 to vector<16x1xf32>
    %260 = arith.addf %256, %259 : vector<16x1xf32>
    %261 = math.rsqrt %260 : vector<16x1xf32>
    %262 = vector.broadcast %261 : vector<16x1xf32> to vector<16x32xf32>
    %263 = arith.mulf %258, %262 : vector<16x32xf32>
    %264 = vector.broadcast %243 : vector<1x32xf32> to vector<16x32xf32>
    %265 = arith.mulf %263, %264 : vector<16x32xf32>
    %266 = vector.broadcast %245 : vector<1x32xf32> to vector<16x32xf32>
    %267 = arith.addf %265, %266 : vector<16x32xf32>
    %c1_113 = arith.constant 1 : index
    %c0_114 = arith.constant 0 : index
    %c0_115 = arith.constant 0 : index
    %268 = vector.load %arg5[%c1_113, %c0_114, %c0_115] : memref<2x32x64xf32, #tpu.memory_space<vmem>>, vector<1x32x64xf32>
    %269 = vector.shape_cast %268 : vector<1x32x64xf32> to vector<32x64xf32>
    %cst_116 = arith.constant dense<0.000000e+00> : vector<16x64xf32>
    %270 = tpu.matmul %267, %269, %cst_116 {dimension_numbers = #tpu.dot_dimension_numbers<[1], [0], [0], [1], [0, 0, 1, 1], [], []>} : vector<16x32xf32>, vector<32x64xf32>, vector<16x64xf32> -> vector<16x64xf32>
    %c1_117 = arith.constant 1 : index
    %c0_118 = arith.constant 0 : index
    %c0_119 = arith.constant 0 : index
    %271 = vector.load %arg6[%c1_117, %c0_118, %c0_119] : memref<2x1x64xf32, #tpu.memory_space<vmem>>, vector<1x1x64xf32>
    %272 = vector.shape_cast %271 : vector<1x1x64xf32> to vector<1x64xf32>
    %273 = vector.broadcast %272 : vector<1x64xf32> to vector<16x64xf32>
    %274 = arith.addf %270, %273 : vector<16x64xf32>
    %cst_120 = arith.constant 0.000000e+00 : f32
    %275 = vector.broadcast %cst_120 : f32 to vector<16x64xf32>
    %276 = arith.maximumf %274, %275 : vector<16x64xf32>
    %c1_121 = arith.constant 1 : index
    %c0_122 = arith.constant 0 : index
    %c0_123 = arith.constant 0 : index
    %277 = vector.load %arg7[%c1_121, %c0_122, %c0_123] : memref<2x64x32xf32, #tpu.memory_space<vmem>>, vector<1x64x32xf32>
    %278 = vector.shape_cast %277 : vector<1x64x32xf32> to vector<64x32xf32>
    %cst_124 = arith.constant dense<0.000000e+00> : vector<16x32xf32>
    %279 = tpu.matmul %276, %278, %cst_124 {dimension_numbers = #tpu.dot_dimension_numbers<[1], [0], [0], [1], [0, 0, 1, 1], [], []>} : vector<16x64xf32>, vector<64x32xf32>, vector<16x32xf32> -> vector<16x32xf32>
    %c1_125 = arith.constant 1 : index
    %c0_126 = arith.constant 0 : index
    %c0_127 = arith.constant 0 : index
    %280 = vector.load %arg8[%c1_125, %c0_126, %c0_127] : memref<2x1x32xf32, #tpu.memory_space<vmem>>, vector<1x1x32xf32>
    %281 = vector.shape_cast %280 : vector<1x1x32xf32> to vector<1x32xf32>
    %282 = vector.broadcast %281 : vector<1x32xf32> to vector<16x32xf32>
    %283 = arith.addf %279, %282 : vector<16x32xf32>
    %284 = arith.addf %267, %283 : vector<16x32xf32>
    %c1_128 = arith.constant 1 : index
    %c0_129 = arith.constant 0 : index
    %c0_130 = arith.constant 0 : index
    %285 = vector.load %arg11[%c1_128, %c0_129, %c0_130] : memref<2x1x32xf32, #tpu.memory_space<vmem>>, vector<1x1x32xf32>
    %286 = vector.shape_cast %285 : vector<1x1x32xf32> to vector<1x32xf32>
    %c1_131 = arith.constant 1 : index
    %c0_132 = arith.constant 0 : index
    %c0_133 = arith.constant 0 : index
    %287 = vector.load %arg12[%c1_131, %c0_132, %c0_133] : memref<2x1x32xf32, #tpu.memory_space<vmem>>, vector<1x1x32xf32>
    %288 = vector.shape_cast %287 : vector<1x1x32xf32> to vector<1x32xf32>
    %cst_134 = arith.constant dense<0.000000e+00> : vector<16xf32>
    %289 = vector.multi_reduction <add>, %284, %cst_134 [1] : vector<16x32xf32> to vector<16xf32>
    %290 = vector.shape_cast %289 : vector<16xf32> to vector<16x1xf32>
    %cst_135 = arith.constant 3.200000e+01 : f32
    %291 = vector.broadcast %cst_135 : f32 to vector<16x1xf32>
    %292 = arith.divf %290, %291 : vector<16x1xf32>
    %293 = vector.broadcast %292 : vector<16x1xf32> to vector<16x32xf32>
    %294 = arith.subf %284, %293 : vector<16x32xf32>
    %295 = arith.mulf %294, %294 : vector<16x32xf32>
    %cst_136 = arith.constant dense<0.000000e+00> : vector<16xf32>
    %296 = vector.multi_reduction <add>, %295, %cst_136 [1] : vector<16x32xf32> to vector<16xf32>
    %297 = vector.shape_cast %296 : vector<16xf32> to vector<16x1xf32>
    %cst_137 = arith.constant 3.200000e+01 : f32
    %298 = vector.broadcast %cst_137 : f32 to vector<16x1xf32>
    %299 = arith.divf %297, %298 : vector<16x1xf32>
    %300 = vector.broadcast %292 : vector<16x1xf32> to vector<16x32xf32>
    %301 = arith.subf %284, %300 : vector<16x32xf32>
    %cst_138 = arith.constant 9.99999974E-6 : f32
    %302 = vector.broadcast %cst_138 : f32 to vector<16x1xf32>
    %303 = arith.addf %299, %302 : vector<16x1xf32>
    %304 = math.rsqrt %303 : vector<16x1xf32>
    %305 = vector.broadcast %304 : vector<16x1xf32> to vector<16x32xf32>
    %306 = arith.mulf %301, %305 : vector<16x32xf32>
    %307 = vector.broadcast %286 : vector<1x32xf32> to vector<16x32xf32>
    %308 = arith.mulf %306, %307 : vector<16x32xf32>
    %309 = vector.broadcast %288 : vector<1x32xf32> to vector<16x32xf32>
    %310 = arith.addf %308, %309 : vector<16x32xf32>
    %c0_139 = arith.constant 0 : index
    %c0_140 = arith.constant 0 : index
    %311 = vector.load %arg13[%c0_139, %c0_140] : memref<32x128xf32, #tpu.memory_space<vmem>>, vector<32x128xf32>
    %cst_141 = arith.constant dense<0.000000e+00> : vector<16x128xf32>
    %312 = tpu.matmul %310, %311, %cst_141 {dimension_numbers = #tpu.dot_dimension_numbers<[1], [0], [0], [1], [0, 0, 1, 1], [], []>} : vector<16x32xf32>, vector<32x128xf32>, vector<16x128xf32> -> vector<16x128xf32>
    %c0_142 = arith.constant 0 : index
    %c0_143 = arith.constant 0 : index
    %313 = vector.load %arg14[%c0_142, %c0_143] : memref<1x128xf32, #tpu.memory_space<vmem>>, vector<1x128xf32>
    %314 = vector.broadcast %313 : vector<1x128xf32> to vector<16x128xf32>
    %315 = arith.addf %312, %314 : vector<16x128xf32>
    %c0_144 = arith.constant 0 : index
    %c0_145 = arith.constant 0 : index
    %316 = vector.load %arg15[%c0_144, %c0_145] : memref<16x128xf32, #tpu.memory_space<vmem>>, vector<16x128xf32>
    tpu.vector_store %arg15[%c0_144, %c0_145], %315 {strides = array<i32>} : memref<16x128xf32, #tpu.memory_space<vmem>>, vector<16x128xf32>,
    return
  }
}

</mosaic_0001>

<llo_original>
// kernel: tpu_custom_call.1
$region0: #{tpu_custom_call.1}
  #allocation0 [shape = 'u32[]', space=smem, size = 0x4, offset = 0x4, fixed_abs, tag = 'smem constant byte address 0x4 - core index']
  #allocation1 [shape = 'u32[72,128]{1,0:T(1,128)}', space=vmem, size = 0x9000, scoped, tag = 'internal scratch']
  %s0 = inlined_call_operand.hbm [shape: f32[16,32], index: 0, kind: input, shape index: {}]
  %s1 = inlined_call_operand.vmem [shape: f32[2,32,96], index: 1, kind: input, shape index: {}]
  %s2 = inlined_call_operand.hbm [shape: f32[2,1,96], index: 2, kind: input, shape index: {}]
  %s3 = inlined_call_operand.vmem [shape: f32[2,32,32], index: 3, kind: input, shape index: {}]
  %s4 = inlined_call_operand.vmem [shape: f32[2,1,32], index: 4, kind: input, shape index: {}]
  %s5 = inlined_call_operand.vmem [shape: f32[2,32,64], index: 5, kind: input, shape index: {}]
  %s6 = inlined_call_operand.vmem [shape: f32[2,1,64], index: 6, kind: input, shape index: {}]
  %s7 = inlined_call_operand.vmem [shape: f32[2,64,32], index: 7, kind: input, shape index: {}]
  %s8 = inlined_call_operand.hbm [shape: f32[2,1,32], index: 8, kind: input, shape index: {}]
  %s9 = inlined_call_operand.vmem [shape: f32[2,1,32], index: 9, kind: input, shape index: {}]
  %s10 = inlined_call_operand.vmem [shape: f32[2,1,32], index: 10, kind: input, shape index: {}]
  %s11 = inlined_call_operand.hbm [shape: f32[2,1,32], index: 11, kind: input, shape index: {}]
  %s12 = inlined_call_operand.vmem [shape: f32[2,1,32], index: 12, kind: input, shape index: {}]
  %s13 = inlined_call_operand.hbm [shape: f32[32,128], index: 13, kind: input, shape index: {}]
  %s14 = inlined_call_operand.vmem [shape: f32[1,128], index: 14, kind: input, shape index: {}]
  %s15 = inlined_call_operand.hbm [shape: f32[16,128], index: 15, kind: output, shape index: {}]
  %s16 = sld [smem:[#allocation0]]
  $region90: #{tpu_custom_call.1} parent=0
    _
  %s18 = ssub.s32 1, %s16
  %s19 = scalar_select 0, %s18, %s16
  $region1: #{tpu_custom_call.1} parent=0
    #allocation2 [shape = 'u8[8192]{0}', space=vmem, size = 0x2000, scoped, tag = 'input window, operand 0, single buffered']
    #allocation3 [shape = 's32[1]{0}', space=sflag, size = 0x4, scoped, tag = 'scoped memory for tpu_custom_call.1']
    #allocation4 [shape = 's32[1]{0}', space=sflag, size = 0x4, scoped, tag = 'scoped memory for tpu_custom_call.1']
    #allocation5 [shape = 'u8[1024]{0}', space=vmem, size = 0x400, scoped, tag = 'input window, operand 2, single buffered']
    #allocation6 [shape = 's32[1]{0}', space=sflag, size = 0x4, scoped, tag = 'scoped memory for tpu_custom_call.1']
    #allocation7 [shape = 'u8[1024]{0}', space=vmem, size = 0x400, scoped, tag = 'input window, operand 8, single buffered']
    #allocation8 [shape = 'u8[1024]{0}', space=vmem, size = 0x400, scoped, tag = 'input window, operand 11, single buffered']
    #allocation9 [shape = 's32[1]{0}', space=sflag, size = 0x4, scoped, tag = 'scoped memory for tpu_custom_call.1']
    #allocation10 [shape = 'u8[16384]{0}', space=vmem, size = 0x4000, scoped, tag = 'input window, operand 13, single buffered']
    #allocation11 [shape = 'u8[8192]{0}', space=vmem, size = 0x2000, scoped, tag = 'output window, operand 0, single buffered']
    %20 = vsyncpa [#allocation3], 0
    %21 = vsyncpa [#allocation6], 0
    %22 = vsyncpa [#allocation9], 0
    %23 = vsyncpa [#allocation4], 0
    // Predicated region
    $region2: #{tpu_custom_call.1} parent=1 // pred_check
      _
    $region3: #{tpu_custom_call.1} parent=1 // pred_check_branch
      %25 = sbr.rel (0) target = $region5
    $region4: #{tpu_custom_call.1} parent=1 // pred_region
      %27 = vsyncadd [#allocation3], 0
      %s28 = sshll.u32 %s0, 4
      %s29 = int_to_ptr.hbm [resolvable:$true] %s28
      %s30 = sshll.u32 [#allocation2], 4
      %s31 = int_to_ptr.vmem [resolvable:$true] %s30
      %36 = dma.hbm_to_vmem [thread:$0]  %s29, 256, %s31, [#allocation3], 128, 128, 8
    $region5: #{tpu_custom_call.1} parent=1 // pred_fallthru
      _
    // Predicated region
    $region6: #{tpu_custom_call.1} parent=1 // pred_check
      _
    $region7: #{tpu_custom_call.1} parent=1 // pred_check_branch
      %38 = sbr.rel (0) target = $region9
    $region8: #{tpu_custom_call.1} parent=1 // pred_region
      _
    $region9: #{tpu_custom_call.1} parent=1 // pred_fallthru
      _
    // Predicated region
    $region10: #{tpu_custom_call.1} parent=1 // pred_check
      _
    $region11: #{tpu_custom_call.1} parent=1 // pred_check_branch
      %40 = sbr.rel (0) target = $region13
    $region12: #{tpu_custom_call.1} parent=1 // pred_region
      %42 = vsyncadd [#allocation6], 0
      %s43 = sshll.u32 %s2, 4
      %s44 = int_to_ptr.hbm [resolvable:$true] %s43
      %s45 = sshll.u32 [#allocation5], 4
      %s46 = int_to_ptr.vmem [resolvable:$true] %s45
      %51 = dma.hbm_to_vmem [thread:$0]  %s44, 32, %s46, [#allocation6], 16, 16, 1
    $region13: #{tpu_custom_call.1} parent=1 // pred_fallthru
      _
    // Predicated region
    $region14: #{tpu_custom_call.1} parent=1 // pred_check
      _
    $region15: #{tpu_custom_call.1} parent=1 // pred_check_branch
      %53 = sbr.rel (0) target = $region17
    $region16: #{tpu_custom_call.1} parent=1 // pred_region
      _
    $region17: #{tpu_custom_call.1} parent=1 // pred_fallthru
      _
    // Predicated region
    $region18: #{tpu_custom_call.1} parent=1 // pred_check
      _
    $region19: #{tpu_custom_call.1} parent=1 // pred_check_branch
      %55 = sbr.rel (0) target = $region21
    $region20: #{tpu_custom_call.1} parent=1 // pred_region
      _
    $region21: #{tpu_custom_call.1} parent=1 // pred_fallthru
      _
    // Predicated region
    $region22: #{tpu_custom_call.1} parent=1 // pred_check
      _
    $region23: #{tpu_custom_call.1} parent=1 // pred_check_branch
      %57 = sbr.rel (0) target = $region25
    $region24: #{tpu_custom_call.1} parent=1 // pred_region
      _
    $region25: #{tpu_custom_call.1} parent=1 // pred_fallthru
      _
    // Predicated region
    $region26: #{tpu_custom_call.1} parent=1 // pred_check
      _
    $region27: #{tpu_custom_call.1} parent=1 // pred_check_branch
      %59 = sbr.rel (0) target = $region29
    $region28: #{tpu_custom_call.1} parent=1 // pred_region
      _
    $region29: #{tpu_custom_call.1} parent=1 // pred_fallthru
      _
    // Predicated region
    $region30: #{tpu_custom_call.1} parent=1 // pred_check
      _
    $region31: #{tpu_custom_call.1} parent=1 // pred_check_branch
      %61 = sbr.rel (0) target = $region33
    $region32: #{tpu_custom_call.1} parent=1 // pred_region
      _
    $region33: #{tpu_custom_call.1} parent=1 // pred_fallthru
      _
    // Predicated region
    $region34: #{tpu_custom_call.1} parent=1 // pred_check
      _
    $region35: #{tpu_custom_call.1} parent=1 // pred_check_branch
      %63 = sbr.rel (0) target = $region37
    $region36: #{tpu_custom_call.1} parent=1 // pred_region
      %65 = vsyncadd [#allocation6], 0
      %s66 = sshll.u32 %s8, 4
      %s67 = int_to_ptr.hbm [resolvable:$true] %s66
      %s68 = sshll.u32 [#allocation7], 4
      %s69 = int_to_ptr.vmem [resolvable:$true] %s68
      %74 = dma.hbm_to_vmem [thread:$0]  %s67, 32, %s69, [#allocation6], 16, 16, 1
    $region37: #{tpu_custom_call.1} parent=1 // pred_fallthru
      _
    // Predicated region
    $region38: #{tpu_custom_call.1} parent=1 // pred_check
      _
    $region39: #{tpu_custom_call.1} parent=1 // pred_check_branch
      %76 = sbr.rel (0) target = $region41
    $region40: #{tpu_custom_call.1} parent=1 // pred_region
      _
    $region41: #{tpu_custom_call.1} parent=1 // pred_fallthru
      _
    // Predicated region
    $region42: #{tpu_custom_call.1} parent=1 // pred_check
      _
    $region43: #{tpu_custom_call.1} parent=1 // pred_check_branch
      %78 = sbr.rel (0) target = $region45
    $region44: #{tpu_custom_call.1} parent=1 // pred_region
      _
    $region45: #{tpu_custom_call.1} parent=1 // pred_fallthru
      _
    // Predicated region
    $region46: #{tpu_custom_call.1} parent=1 // pred_check
      _
    $region47: #{tpu_custom_call.1} parent=1 // pred_check_branch
      %80 = sbr.rel (0) target = $region49
    $region48: #{tpu_custom_call.1} parent=1 // pred_region
      %82 = vsyncadd [#allocation9], 0
      %s83 = sshll.u32 %s11, 4
      %s84 = int_to_ptr.hbm [resolvable:$true] %s83
      %s85 = sshll.u32 [#allocation8], 4
      %s86 = int_to_ptr.vmem [resolvable:$true] %s85
      %91 = dma.hbm_to_vmem [thread:$0]  %s84, 32, %s86, [#allocation9], 16, 16, 1
    $region49: #{tpu_custom_call.1} parent=1 // pred_fallthru
      _
    // Predicated region
    $region50: #{tpu_custom_call.1} parent=1 // pred_check
      _
    $region51: #{tpu_custom_call.1} parent=1 // pred_check_branch
      %93 = sbr.rel (0) target = $region53
    $region52: #{tpu_custom_call.1} parent=1 // pred_region
      _
    $region53: #{tpu_custom_call.1} parent=1 // pred_fallthru
      _
    // Predicated region
    $region54: #{tpu_custom_call.1} parent=1 // pred_check
      _
    $region55: #{tpu_custom_call.1} parent=1 // pred_check_branch
      %95 = sbr.rel (0) target = $region57
    $region56: #{tpu_custom_call.1} parent=1 // pred_region
      %97 = vsyncadd [#allocation9], 0
      %s98 = sshll.u32 %s13, 4
      %s99 = int_to_ptr.hbm [resolvable:$true] %s98
      %s100 = sshll.u32 [#allocation10], 4
      %s101 = int_to_ptr.vmem [resolvable:$true] %s100
      %106 = dma.hbm_to_vmem [thread:$0]  %s99, 512, %s101, [#allocation9], 128, 128, 8
    $region57: #{tpu_custom_call.1} parent=1 // pred_fallthru
      _
    // Predicated region
    $region58: #{tpu_custom_call.1} parent=1 // pred_check
      _
    $region59: #{tpu_custom_call.1} parent=1 // pred_check_branch
      %108 = sbr.rel (0) target = $region61
    $region60: #{tpu_custom_call.1} parent=1 // pred_region
      _
    $region61: #{tpu_custom_call.1} parent=1 // pred_fallthru
      _
    // Predicated region
    $region62: #{tpu_custom_call.1} parent=1 // pred_check
      _
    $region63: #{tpu_custom_call.1} parent=1 // pred_check_branch
      %110 = sbr.rel (0) target = $region65
    $region64: #{tpu_custom_call.1} parent=1 // pred_region
      %112 = dma.done [#allocation3], 256
    $region65: #{tpu_custom_call.1} parent=1 // pred_fallthru
      _
    // Predicated region
    $region66: #{tpu_custom_call.1} parent=1 // pred_check
      _
    $region67: #{tpu_custom_call.1} parent=1 // pred_check_branch
      %114 = sbr.rel (0) target = $region69
    $region68: #{tpu_custom_call.1} parent=1 // pred_region
      %116 = dma.done [#allocation6], 32
    $region69: #{tpu_custom_call.1} parent=1 // pred_fallthru
      _
    // Predicated region
    $region70: #{tpu_custom_call.1} parent=1 // pred_check
      _
    $region71: #{tpu_custom_call.1} parent=1 // pred_check_branch
      %118 = sbr.rel (0) target = $region73
    $region72: #{tpu_custom_call.1} parent=1 // pred_region
      %120 = dma.done [#allocation6], 32
    $region73: #{tpu_custom_call.1} parent=1 // pred_fallthru
      _
    // Predicated region
    $region74: #{tpu_custom_call.1} parent=1 // pred_check
      _
    $region75: #{tpu_custom_call.1} parent=1 // pred_check_branch
      %122 = sbr.rel (0) target = $region77
    $region76: #{tpu_custom_call.1} parent=1 // pred_region
      %124 = dma.done [#allocation9], 32
    $region77: #{tpu_custom_call.1} parent=1 // pred_fallthru
      _
    // Predicated region
    $region78: #{tpu_custom_call.1} parent=1 // pred_check
      _
    $region79: #{tpu_custom_call.1} parent=1 // pred_check_branch
      %126 = sbr.rel (0) target = $region81
    $region80: #{tpu_custom_call.1} parent=1 // pred_region
      %128 = dma.done [#allocation9], 512
    $region81: #{tpu_custom_call.1} parent=1 // pred_fallthru
      _
    %v129 = vld [vmem:[#allocation2] sm:$0xff]
    %v130 = vld [vmem:[#allocation2 + $0x8] sm:$0xff]
    %v131 = vld [vmem:[%s1] sm:$0xff]
    %v132 = vld [vmem:[%s1 + $0x8] sm:$0xff]
    %v133 = vld [vmem:[%s1 + $0x10] sm:$0xff]
    %v134 = vld [vmem:[%s1 + $0x18] sm:$0xff]
    %v135 = vld [vmem:[#allocation5] sm:$0x1]
    %v136 = vld [vmem:[%s3] sm:$0xff]
    %v137 = vld [vmem:[%s3 + $0x8] sm:$0xff]
    %v138 = vld [vmem:[%s3 + $0x10] sm:$0xff]
    %v139 = vld [vmem:[%s3 + $0x18] sm:$0xff]
    %v141 = vperm.slane %v135, 0
    %vm143 = vcmask 261120
    %v145 = vsel %vm143, %v129, 0
    %v148 = vsel %vm143, %v130, 0
    %150 = vmatpush.msra.mxu0 0.0
    %151 = vmatpush.msra.mxu0 0.0
    %152 = vmatpush.msra.mxu0 0.0
    %153 = vmatpush.msra.mxu0 0.0
    %154 = vmatpush.msra.mxu0 0.0
    %155 = vmatpush.msra.mxu0 0.0
    %156 = vmatpush.msra.mxu0 0.0
    %157 = vmatpush.msra.mxu0 0.0
    %158 = vmatpush.msra.mxu0 0.0
    %159 = vmatpush.msra.mxu0 0.0
    %160 = vmatpush.msra.mxu0 0.0
    %161 = vmatpush.msra.mxu0 0.0
    %162 = vmatpush.msra.mxu0 %v134
    %163 = vmatpush.msra.mxu0 %v133
    %164 = vmatpush.msra.mxu0 %v132
    %165 = vmatpush.msra.mxu0 %v131
    %166 = vmatmul.f32.gmra.mxu0 %v145
    %v167 = vpop.f32.mrf.mxu0
    %v168 = vadd.f32 %v141, %v167
    %169 = vmatmul.f32.gmra.mxu0 %v148
    %v170 = vpop.f32.mrf.mxu0
    %v171 = vadd.f32 %v141, %v170
    %172 = vdwg.mxu0
    %174 = vrot.lane.b32.xlu0 %v168, 96
    %v175 = vpop.permute.xlu0 %174
    %vm176 = vcmask 64512
    %v177 = vsel %vm176, %v168, 0
    %v179 = vsel %vm176, %v175, 0
    %181 = vmatpush.xpose.msra.mxu0 0.0
    %182 = vmatpush.xpose.msra.mxu0 0.0
    %183 = vmatpush.xpose.msra.mxu0 0.0
    %184 = vmatpush.xpose.msra.mxu0 0.0
    %185 = vmatpush.xpose.msra.mxu0 0.0
    %186 = vmatpush.xpose.msra.mxu0 0.0
    %187 = vmatpush.xpose.msra.mxu0 0.0
    %188 = vmatpush.xpose.msra.mxu0 0.0
    %189 = vmatpush.xpose.msra.mxu0 0.0
    %190 = vmatpush.xpose.msra.mxu0 0.0
    %191 = vmatpush.xpose.msra.mxu0 0.0
    %192 = vmatpush.xpose.msra.mxu0 0.0
    %193 = vmatpush.xpose.msra.mxu0 0.0
    %194 = vmatpush.xpose.msra.mxu0 0.0
    %195 = vmatpush.xpose.msra.mxu0 0.0
    %196 = vmatpush.xpose.msra.mxu0 %v179
    %197 = vmatmul.f32.gmra.mxu0 %v177
    %v198 = vpop.f32.mrf.mxu0
    %v199 = vadd.f32 0.0, %v198
    %200 = vdwg.mxu0
    %202 = vrot.lane.b32.xlu0 %v171, 96
    %v203 = vpop.permute.xlu0 %202
    %v204 = vsel %vm176, %v171, 0
    %v206 = vsel %vm176, %v203, 0
    %208 = vmatpush.xpose.msra.mxu0 0.0
    %209 = vmatpush.xpose.msra.mxu0 0.0
    %210 = vmatpush.xpose.msra.mxu0 0.0
    %211 = vmatpush.xpose.msra.mxu0 0.0
    %212 = vmatpush.xpose.msra.mxu0 0.0
    %213 = vmatpush.xpose.msra.mxu0 0.0
    %214 = vmatpush.xpose.msra.mxu0 0.0
    %215 = vmatpush.xpose.msra.mxu0 0.0
    %216 = vmatpush.xpose.msra.mxu0 0.0
    %217 = vmatpush.xpose.msra.mxu0 0.0
    %218 = vmatpush.xpose.msra.mxu0 0.0
    %219 = vmatpush.xpose.msra.mxu0 0.0
    %220 = vmatpush.xpose.msra.mxu0 0.0
    %221 = vmatpush.xpose.msra.mxu0 0.0
    %222 = vmatpush.xpose.msra.mxu0 0.0
    %223 = vmatpush.xpose.msra.mxu0 %v206
    %224 = vmatmul.f32.gmra.mxu0 %v204
    %v225 = vpop.f32.mrf.mxu0
    %v226 = vadd.f32 0.0, %v225
    %227 = vdwg.mxu0
    %v228 = vsel %vm176, %v199, -inf
    %229 = vmax.xlane.f32.xlu0 %v228
    %v230 = vpop.xlane.xlu0 %229
    %v231 = vsel %vm176, %v226, -inf
    %232 = vmax.xlane.f32.xlu0 %v231
    %v233 = vpop.xlane.xlu0 %232
    %v234 = vsub.f32 %v199, %v230
    %v235 = vsub.f32 %v226, %v233
    %v236 = vmul.f32 %v234, 1.442695
    %v237 = vpow.pop %v236
    %v238 = vmul.f32 %v235, 1.442695
    %v239 = vpow.pop %v238
    %v240 = vsel %vm176, %v237, 0.0
    %241 = vadd.xlane.f32.xlu0 %v240
    %v242 = vpop.xlane.xlu0 %241
    %v243 = vsel %vm176, %v239, 0.0
    %244 = vadd.xlane.f32.xlu0 %v243
    %v245 = vpop.xlane.xlu0 %244
    %v246 = vrcp.pop %v242
    %v247 = vmul.f32 %v242, %v246
    %v248 = vsub.f32 1.0, %v247
    %v249 = vmul.f32 %v246, %v248
    %v250 = vadd.f32 %v246, %v249
    %vm251 = vweird.f32 %v242
    %vm252 = vweird.f32 %v246
    %vm253 = vmor %vm251, %vm252
    %v254 = vsel %vm253, %v246, %v250
    %v255 = vand.u32 2147483647, %v242
    %vm256 = vcmp.eq.f32.partialorder %v255, 8.507059e+37
    %v257 = vand.u32 %v242, 2147483648
    %v258 = vor.u32 1.1754944e-38, %v257
    %v259 = vsel %vm256, %v258, %v254
    %v260 = vmul.f32 %v237, %v259
    %v261 = vrcp.pop %v245
    %v262 = vmul.f32 %v245, %v261
    %v263 = vsub.f32 1.0, %v262
    %v264 = vmul.f32 %v261, %v263
    %v265 = vadd.f32 %v261, %v264
    %vm266 = vweird.f32 %v245
    %vm267 = vweird.f32 %v261
    %vm268 = vmor %vm266, %vm267
    %v269 = vsel %vm268, %v261, %v265
    %v270 = vand.u32 2147483647, %v245
    %vm271 = vcmp.eq.f32.partialorder %v270, 8.507059e+37
    %v272 = vand.u32 %v245, 2147483648
    %v273 = vor.u32 1.1754944e-38, %v272
    %v274 = vsel %vm271, %v273, %v269
    %v275 = vmul.f32 %v239, %v274
    %276 = vrot.lane.b32.xlu0 %v168, 64
    %v277 = vpop.permute.xlu0 %276
    %v280 = vsel %vm176, %v260, 0
    %282 = vmatpush.msra.mxu0 0.0
    %283 = vmatpush.msra.mxu0 0.0
    %284 = vmatpush.msra.mxu0 0.0
    %285 = vmatpush.msra.mxu0 0.0
    %286 = vmatpush.msra.mxu0 0.0
    %287 = vmatpush.msra.mxu0 0.0
    %288 = vmatpush.msra.mxu0 0.0
    %289 = vmatpush.msra.mxu0 0.0
    %290 = vmatpush.msra.mxu0 0.0
    %291 = vmatpush.msra.mxu0 0.0
    %292 = vmatpush.msra.mxu0 0.0
    %293 = vmatpush.msra.mxu0 0.0
    %294 = vmatpush.msra.mxu0 0.0
    %295 = vmatpush.msra.mxu0 0.0
    %296 = vmatpush.msra.mxu0 0.0
    %297 = vmatpush.msra.mxu0 %v277
    %298 = vmatmul.f32.gmra.mxu0 %v280
    %v299 = vpop.f32.mrf.mxu0
    %v300 = vadd.f32 0.0, %v299
    %301 = vdwg.mxu0
    %302 = vrot.lane.b32.xlu0 %v171, 64
    %v303 = vpop.permute.xlu0 %302
    %v306 = vsel %vm176, %v275, 0
    %308 = vmatpush.msra.mxu0 0.0
    %309 = vmatpush.msra.mxu0 0.0
    %310 = vmatpush.msra.mxu0 0.0
    %311 = vmatpush.msra.mxu0 0.0
    %312 = vmatpush.msra.mxu0 0.0
    %313 = vmatpush.msra.mxu0 0.0
    %314 = vmatpush.msra.mxu0 0.0
    %315 = vmatpush.msra.mxu0 0.0
    %316 = vmatpush.msra.mxu0 0.0
    %317 = vmatpush.msra.mxu0 0.0
    %318 = vmatpush.msra.mxu0 0.0
    %319 = vmatpush.msra.mxu0 0.0
    %320 = vmatpush.msra.mxu0 0.0
    %321 = vmatpush.msra.mxu0 0.0
    %322 = vmatpush.msra.mxu0 0.0
    %323 = vmatpush.msra.mxu0 %v303
    %324 = vmatmul.f32.gmra.mxu0 %v306
    %v325 = vpop.f32.mrf.mxu0
    %v326 = vadd.f32 0.0, %v325
    %327 = vdwg.mxu0
    %328 = vrot.lane.b32.xlu0 %v168, 120
    %v329 = vpop.permute.xlu0 %328
    %330 = vrot.lane.b32.xlu0 %v168, 88
    %v331 = vpop.permute.xlu0 %330
    %v332 = vsel %vm176, %v329, 0
    %v334 = vsel %vm176, %v331, 0
    %336 = vmatpush.xpose.msra.mxu0 0.0
    %337 = vmatpush.xpose.msra.mxu0 0.0
    %338 = vmatpush.xpose.msra.mxu0 0.0
    %339 = vmatpush.xpose.msra.mxu0 0.0
    %340 = vmatpush.xpose.msra.mxu0 0.0
    %341 = vmatpush.xpose.msra.mxu0 0.0
    %342 = vmatpush.xpose.msra.mxu0 0.0
    %343 = vmatpush.xpose.msra.mxu0 0.0
    %344 = vmatpush.xpose.msra.mxu0 0.0
    %345 = vmatpush.xpose.msra.mxu0 0.0
    %346 = vmatpush.xpose.msra.mxu0 0.0
    %347 = vmatpush.xpose.msra.mxu0 0.0
    %348 = vmatpush.xpose.msra.mxu0 0.0
    %349 = vmatpush.xpose.msra.mxu0 0.0
    %350 = vmatpush.xpose.msra.mxu0 0.0
    %351 = vmatpush.xpose.msra.mxu0 %v334
    %352 = vmatmul.f32.gmra.mxu0 %v332
    %v353 = vpop.f32.mrf.mxu0
    %v354 = vadd.f32 0.0, %v353
    %355 = vdwg.mxu0
    %356 = vrot.lane.b32.xlu0 %v171, 120
    %v357 = vpop.permute.xlu0 %356
    %358 = vrot.lane.b32.xlu0 %v171, 88
    %v359 = vpop.permute.xlu0 %358
    %v360 = vsel %vm176, %v357, 0
    %v362 = vsel %vm176, %v359, 0
    %364 = vmatpush.xpose.msra.mxu0 0.0
    %365 = vmatpush.xpose.msra.mxu0 0.0
    %366 = vmatpush.xpose.msra.mxu0 0.0
    %367 = vmatpush.xpose.msra.mxu0 0.0
    %368 = vmatpush.xpose.msra.mxu0 0.0
    %369 = vmatpush.xpose.msra.mxu0 0.0
    %370 = vmatpush.xpose.msra.mxu0 0.0
    %371 = vmatpush.xpose.msra.mxu0 0.0
    %372 = vmatpush.xpose.msra.mxu0 0.0
    %373 = vmatpush.xpose.msra.mxu0 0.0
    %374 = vmatpush.xpose.msra.mxu0 0.0
    %375 = vmatpush.xpose.msra.mxu0 0.0
    %376 = vmatpush.xpose.msra.mxu0 0.0
    %377 = vmatpush.xpose.msra.mxu0 0.0
    %378 = vmatpush.xpose.msra.mxu0 0.0
    %379 = vmatpush.xpose.msra.mxu0 %v362
    %380 = vmatmul.f32.gmra.mxu0 %v360
    %v381 = vpop.f32.mrf.mxu0
    %v382 = vadd.f32 0.0, %v381
    %383 = vdwg.mxu0
    %v384 = vsel %vm176, %v354, -inf
    %385 = vmax.xlane.f32.xlu0 %v384
    %v386 = vpop.xlane.xlu0 %385
    %v387 = vsel %vm176, %v382, -inf
    %388 = vmax.xlane.f32.xlu0 %v387
    %v389 = vpop.xlane.xlu0 %388
    %v390 = vsub.f32 %v354, %v386
    %v391 = vsub.f32 %v382, %v389
    %v392 = vmul.f32 %v390, 1.442695
    %v393 = vpow.pop %v392
    %v394 = vmul.f32 %v391, 1.442695
    %v395 = vpow.pop %v394
    %v396 = vsel %vm176, %v393, 0.0
    %397 = vadd.xlane.f32.xlu0 %v396
    %v398 = vpop.xlane.xlu0 %397
    %v399 = vsel %vm176, %v395, 0.0
    %400 = vadd.xlane.f32.xlu0 %v399
    %v401 = vpop.xlane.xlu0 %400
    %v402 = vrcp.pop %v398
    %v403 = vmul.f32 %v398, %v402
    %v404 = vsub.f32 1.0, %v403
    %v405 = vmul.f32 %v402, %v404
    %v406 = vadd.f32 %v402, %v405
    %vm407 = vweird.f32 %v398
    %vm408 = vweird.f32 %v402
    %vm409 = vmor %vm407, %vm408
    %v410 = vsel %vm409, %v402, %v406
    %v411 = vand.u32 2147483647, %v398
    %vm412 = vcmp.eq.f32.partialorder %v411, 8.507059e+37
    %v413 = vand.u32 %v398, 2147483648
    %v414 = vor.u32 1.1754944e-38, %v413
    %v415 = vsel %vm412, %v414, %v410
    %v416 = vmul.f32 %v393, %v415
    %v417 = vrcp.pop %v401
    %v418 = vmul.f32 %v401, %v417
    %v419 = vsub.f32 1.0, %v418
    %v420 = vmul.f32 %v417, %v419
    %v421 = vadd.f32 %v417, %v420
    %vm422 = vweird.f32 %v401
    %vm423 = vweird.f32 %v417
    %vm424 = vmor %vm422, %vm423
    %v425 = vsel %vm424, %v417, %v421
    %v426 = vand.u32 2147483647, %v401
    %vm427 = vcmp.eq.f32.partialorder %v426, 8.507059e+37
    %v428 = vand.u32 %v401, 2147483648
    %v429 = vor.u32 1.1754944e-38, %v428
    %v430 = vsel %vm427, %v429, %v425
    %v431 = vmul.f32 %v395, %v430
    %432 = vrot.lane.b32.xlu0 %v168, 56
    %v433 = vpop.permute.xlu0 %432
    %v436 = vsel %vm176, %v416, 0
    %438 = vmatpush.msra.mxu0 0.0
    %439 = vmatpush.msra.mxu0 0.0
    %440 = vmatpush.msra.mxu0 0.0
    %441 = vmatpush.msra.mxu0 0.0
    %442 = vmatpush.msra.mxu0 0.0
    %443 = vmatpush.msra.mxu0 0.0
    %444 = vmatpush.msra.mxu0 0.0
    %445 = vmatpush.msra.mxu0 0.0
    %446 = vmatpush.msra.mxu0 0.0
    %447 = vmatpush.msra.mxu0 0.0
    %448 = vmatpush.msra.mxu0 0.0
    %449 = vmatpush.msra.mxu0 0.0
    %450 = vmatpush.msra.mxu0 0.0
    %451 = vmatpush.msra.mxu0 0.0
    %452 = vmatpush.msra.mxu0 0.0
    %453 = vmatpush.msra.mxu0 %v433
    %454 = vmatmul.f32.gmra.mxu0 %v436
    %v455 = vpop.f32.mrf.mxu0
    %v456 = vadd.f32 0.0, %v455
    %457 = vdwg.mxu0
    %458 = vrot.lane.b32.xlu0 %v171, 56
    %v459 = vpop.permute.xlu0 %458
    %v462 = vsel %vm176, %v431, 0
    %464 = vmatpush.msra.mxu0 0.0
    %465 = vmatpush.msra.mxu0 0.0
    %466 = vmatpush.msra.mxu0 0.0
    %467 = vmatpush.msra.mxu0 0.0
    %468 = vmatpush.msra.mxu0 0.0
    %469 = vmatpush.msra.mxu0 0.0
    %470 = vmatpush.msra.mxu0 0.0
    %471 = vmatpush.msra.mxu0 0.0
    %472 = vmatpush.msra.mxu0 0.0
    %473 = vmatpush.msra.mxu0 0.0
    %474 = vmatpush.msra.mxu0 0.0
    %475 = vmatpush.msra.mxu0 0.0
    %476 = vmatpush.msra.mxu0 0.0
    %477 = vmatpush.msra.mxu0 0.0
    %478 = vmatpush.msra.mxu0 0.0
    %479 = vmatpush.msra.mxu0 %v459
    %480 = vmatmul.f32.gmra.mxu0 %v462
    %v481 = vpop.f32.mrf.mxu0
    %v482 = vadd.f32 0.0, %v481
    %483 = vdwg.mxu0
    %v485 = vsel %vm176, %v456, 0
    %v488 = vsel %vm176, %v482, 0
    %490 = vmatpush.msra.mxu0 0.0
    %491 = vmatpush.msra.mxu0 0.0
    %492 = vmatpush.msra.mxu0 0.0
    %493 = vmatpush.msra.mxu0 0.0
    %494 = vmatpush.msra.mxu0 0.0
    %495 = vmatpush.msra.mxu0 0.0
    %496 = vmatpush.msra.mxu0 0.0
    %497 = vmatpush.msra.mxu0 0.0
    %498 = vmatpush.msra.mxu0 0.0
    %499 = vmatpush.msra.mxu0 0.0
    %500 = vmatpush.msra.mxu0 0.0
    %501 = vmatpush.msra.mxu0 0.0
    %502 = vmatpush.msra.mxu0 0.0
    %503 = vmatpush.msra.mxu0 0.0
    %504 = vmatpush.msra.mxu0 0.0
    %505 = vmatpush.msra.mxu0 %v137
    %506 = vmatmul.f32.gmra.mxu0 %v485
    %v507 = vpop.f32.mrf.mxu0
    %v508 = vadd.f32 0.0, %v507
    %509 = vmatmul.f32.gmra.mxu0 %v488
    %v510 = vpop.f32.mrf.mxu0
    %v511 = vadd.f32 0.0, %v510
    %512 = vdwg.mxu0
    %v514 = vsel %vm176, %v300, 0
    %v517 = vsel %vm176, %v326, 0
    %519 = vmatpush.msra.mxu0 0.0
    %520 = vmatpush.msra.mxu0 0.0
    %521 = vmatpush.msra.mxu0 0.0
    %522 = vmatpush.msra.mxu0 0.0
    %523 = vmatpush.msra.mxu0 0.0
    %524 = vmatpush.msra.mxu0 0.0
    %525 = vmatpush.msra.mxu0 0.0
    %526 = vmatpush.msra.mxu0 0.0
    %527 = vmatpush.msra.mxu0 0.0
    %528 = vmatpush.msra.mxu0 0.0
    %529 = vmatpush.msra.mxu0 0.0
    %530 = vmatpush.msra.mxu0 0.0
    %531 = vmatpush.msra.mxu0 0.0
    %532 = vmatpush.msra.mxu0 0.0
    %533 = vmatpush.msra.mxu0 0.0
    %534 = vmatpush.msra.mxu0 %v136
    %535 = vmatmul.f32.gmra.mxu0 %v514
    %v536 = vpop.f32.mrf.mxu0
    %v537 = vadd.f32 %v508, %v536
    %538 = vmatmul.f32.gmra.mxu0 %v517
    %v539 = vpop.f32.mrf.mxu0
    %v540 = vadd.f32 %v511, %v539
    %541 = vdwg.mxu0
    %542 = vrot.lane.b32.xlu0 %v168, 112
    %v543 = vpop.permute.xlu0 %542
    %544 = vrot.lane.b32.xlu0 %v168, 80
    %v545 = vpop.permute.xlu0 %544
    %v546 = vsel %vm176, %v543, 0
    %v548 = vsel %vm176, %v545, 0
    %550 = vmatpush.xpose.msra.mxu0 0.0
    %551 = vmatpush.xpose.msra.mxu0 0.0
    %552 = vmatpush.xpose.msra.mxu0 0.0
    %553 = vmatpush.xpose.msra.mxu0 0.0
    %554 = vmatpush.xpose.msra.mxu0 0.0
    %555 = vmatpush.xpose.msra.mxu0 0.0
    %556 = vmatpush.xpose.msra.mxu0 0.0
    %557 = vmatpush.xpose.msra.mxu0 0.0
    %558 = vmatpush.xpose.msra.mxu0 0.0
    %559 = vmatpush.xpose.msra.mxu0 0.0
    %560 = vmatpush.xpose.msra.mxu0 0.0
    %561 = vmatpush.xpose.msra.mxu0 0.0
    %562 = vmatpush.xpose.msra.mxu0 0.0
    %563 = vmatpush.xpose.msra.mxu0 0.0
    %564 = vmatpush.xpose.msra.mxu0 0.0
    %565 = vmatpush.xpose.msra.mxu0 %v548
    %566 = vmatmul.f32.gmra.mxu0 %v546
    %v567 = vpop.f32.mrf.mxu0
    %v568 = vadd.f32 0.0, %v567
    %569 = vdwg.mxu0
    %570 = vrot.lane.b32.xlu0 %v171, 112
    %v571 = vpop.permute.xlu0 %570
    %572 = vrot.lane.b32.xlu0 %v171, 80
    %v573 = vpop.permute.xlu0 %572
    %v574 = vsel %vm176, %v571, 0
    %v576 = vsel %vm176, %v573, 0
    %578 = vmatpush.xpose.msra.mxu0 0.0
    %579 = vmatpush.xpose.msra.mxu0 0.0
    %580 = vmatpush.xpose.msra.mxu0 0.0
    %581 = vmatpush.xpose.msra.mxu0 0.0
    %582 = vmatpush.xpose.msra.mxu0 0.0
    %583 = vmatpush.xpose.msra.mxu0 0.0
    %584 = vmatpush.xpose.msra.mxu0 0.0
    %585 = vmatpush.xpose.msra.mxu0 0.0
    %586 = vmatpush.xpose.msra.mxu0 0.0
    %587 = vmatpush.xpose.msra.mxu0 0.0
    %588 = vmatpush.xpose.msra.mxu0 0.0
    %589 = vmatpush.xpose.msra.mxu0 0.0
    %590 = vmatpush.xpose.msra.mxu0 0.0
    %591 = vmatpush.xpose.msra.mxu0 0.0
    %592 = vmatpush.xpose.msra.mxu0 0.0
    %593 = vmatpush.xpose.msra.mxu0 %v576
    %594 = vmatmul.f32.gmra.mxu0 %v574
    %v595 = vpop.f32.mrf.mxu0
    %v596 = vadd.f32 0.0, %v595
    %597 = vdwg.mxu0
    %v598 = vsel %vm176, %v568, -inf
    %599 = vmax.xlane.f32.xlu0 %v598
    %v600 = vpop.xlane.xlu0 %599
    %v601 = vsel %vm176, %v596, -inf
    %602 = vmax.xlane.f32.xlu0 %v601
    %v603 = vpop.xlane.xlu0 %602
    %v604 = vsub.f32 %v568, %v600
    %v605 = vsub.f32 %v596, %v603
    %v606 = vmul.f32 %v604, 1.442695
    %v607 = vpow.pop %v606
    %v608 = vmul.f32 %v605, 1.442695
    %v609 = vpow.pop %v608
    %v610 = vsel %vm176, %v607, 0.0
    %611 = vadd.xlane.f32.xlu0 %v610
    %v612 = vpop.xlane.xlu0 %611
    %v613 = vsel %vm176, %v609, 0.0
    %614 = vadd.xlane.f32.xlu0 %v613
    %v615 = vpop.xlane.xlu0 %614
    %v616 = vrcp.pop %v612
    %v617 = vmul.f32 %v612, %v616
    %v618 = vsub.f32 1.0, %v617
    %v619 = vmul.f32 %v616, %v618
    %v620 = vadd.f32 %v616, %v619
    %vm621 = vweird.f32 %v612
    %vm622 = vweird.f32 %v616
    %vm623 = vmor %vm621, %vm622
    %v624 = vsel %vm623, %v616, %v620
    %v625 = vand.u32 2147483647, %v612
    %vm626 = vcmp.eq.f32.partialorder %v625, 8.507059e+37
    %v627 = vand.u32 %v612, 2147483648
    %v628 = vor.u32 1.1754944e-38, %v627
    %v629 = vsel %vm626, %v628, %v624
    %v630 = vmul.f32 %v607, %v629
    %v631 = vrcp.pop %v615
    %v632 = vmul.f32 %v615, %v631
    %v633 = vsub.f32 1.0, %v632
    %v634 = vmul.f32 %v631, %v633
    %v635 = vadd.f32 %v631, %v634
    %vm636 = vweird.f32 %v615
    %vm637 = vweird.f32 %v631
    %vm638 = vmor %vm636, %vm637
    %v639 = vsel %vm638, %v631, %v635
    %v640 = vand.u32 2147483647, %v615
    %vm641 = vcmp.eq.f32.partialorder %v640, 8.507059e+37
    %v642 = vand.u32 %v615, 2147483648
    %v643 = vor.u32 1.1754944e-38, %v642
    %v644 = vsel %vm641, %v643, %v639
    %v645 = vmul.f32 %v609, %v644
    %646 = vrot.lane.b32.xlu0 %v168, 48
    %v647 = vpop.permute.xlu0 %646
    %v650 = vsel %vm176, %v630, 0
    %652 = vmatpush.msra.mxu0 0.0
    %653 = vmatpush.msra.mxu0 0.0
    %654 = vmatpush.msra.mxu0 0.0
    %655 = vmatpush.msra.mxu0 0.0
    %656 = vmatpush.msra.mxu0 0.0
    %657 = vmatpush.msra.mxu0 0.0
    %658 = vmatpush.msra.mxu0 0.0
    %659 = vmatpush.msra.mxu0 0.0
    %660 = vmatpush.msra.mxu0 0.0
    %661 = vmatpush.msra.mxu0 0.0
    %662 = vmatpush.msra.mxu0 0.0
    %663 = vmatpush.msra.mxu0 0.0
    %664 = vmatpush.msra.mxu0 0.0
    %665 = vmatpush.msra.mxu0 0.0
    %666 = vmatpush.msra.mxu0 0.0
    %667 = vmatpush.msra.mxu0 %v647
    %668 = vmatmul.f32.gmra.mxu0 %v650
    %v669 = vpop.f32.mrf.mxu0
    %v670 = vadd.f32 0.0, %v669
    %671 = vdwg.mxu0
    %672 = vrot.lane.b32.xlu0 %v171, 48
    %v673 = vpop.permute.xlu0 %672
    %v676 = vsel %vm176, %v645, 0
    %678 = vmatpush.msra.mxu0 0.0
    %679 = vmatpush.msra.mxu0 0.0
    %680 = vmatpush.msra.mxu0 0.0
    %681 = vmatpush.msra.mxu0 0.0
    %682 = vmatpush.msra.mxu0 0.0
    %683 = vmatpush.msra.mxu0 0.0
    %684 = vmatpush.msra.mxu0 0.0
    %685 = vmatpush.msra.mxu0 0.0
    %686 = vmatpush.msra.mxu0 0.0
    %687 = vmatpush.msra.mxu0 0.0
    %688 = vmatpush.msra.mxu0 0.0
    %689 = vmatpush.msra.mxu0 0.0
    %690 = vmatpush.msra.mxu0 0.0
    %691 = vmatpush.msra.mxu0 0.0
    %692 = vmatpush.msra.mxu0 0.0
    %693 = vmatpush.msra.mxu0 %v673
    %694 = vmatmul.f32.gmra.mxu0 %v676
    %v695 = vpop.f32.mrf.mxu0
    %v696 = vadd.f32 0.0, %v695
    %697 = vdwg.mxu0
    %v699 = vsel %vm176, %v670, 0
    %v702 = vsel %vm176, %v696, 0
    %704 = vmatpush.msra.mxu0 0.0
    %705 = vmatpush.msra.mxu0 0.0
    %706 = vmatpush.msra.mxu0 0.0
    %707 = vmatpush.msra.mxu0 0.0
    %708 = vmatpush.msra.mxu0 0.0
    %709 = vmatpush.msra.mxu0 0.0
    %710 = vmatpush.msra.mxu0 0.0
    %711 = vmatpush.msra.mxu0 0.0
    %712 = vmatpush.msra.mxu0 0.0
    %713 = vmatpush.msra.mxu0 0.0
    %714 = vmatpush.msra.mxu0 0.0
    %715 = vmatpush.msra.mxu0 0.0
    %716 = vmatpush.msra.mxu0 0.0
    %717 = vmatpush.msra.mxu0 0.0
    %718 = vmatpush.msra.mxu0 0.0
    %719 = vmatpush.msra.mxu0 %v138
    %720 = vmatmul.f32.gmra.mxu0 %v699
    %v721 = vpop.f32.mrf.mxu0
    %v722 = vadd.f32 0.0, %v721
    %723 = vmatmul.f32.gmra.mxu0 %v702
    %v724 = vpop.f32.mrf.mxu0
    %v725 = vadd.f32 0.0, %v724
    %726 = vdwg.mxu0
    %v727 = vadd.f32 %v537, %v722
    %v728 = vadd.f32 %v540, %v725
    %729 = vrot.lane.b32.xlu0 %v168, 104
    %v730 = vpop.permute.xlu0 %729
    %731 = vrot.lane.b32.xlu0 %v168, 72
    %v732 = vpop.permute.xlu0 %731
    %v733 = vsel %vm176, %v730, 0
    %v735 = vsel %vm176, %v732, 0
    %737 = vmatpush.xpose.msra.mxu0 0.0
    %738 = vmatpush.xpose.msra.mxu0 0.0
    %739 = vmatpush.xpose.msra.mxu0 0.0
    %740 = vmatpush.xpose.msra.mxu0 0.0
    %741 = vmatpush.xpose.msra.mxu0 0.0
    %742 = vmatpush.xpose.msra.mxu0 0.0
    %743 = vmatpush.xpose.msra.mxu0 0.0
    %744 = vmatpush.xpose.msra.mxu0 0.0
    %745 = vmatpush.xpose.msra.mxu0 0.0
    %746 = vmatpush.xpose.msra.mxu0 0.0
    %747 = vmatpush.xpose.msra.mxu0 0.0
    %748 = vmatpush.xpose.msra.mxu0 0.0
    %749 = vmatpush.xpose.msra.mxu0 0.0
    %750 = vmatpush.xpose.msra.mxu0 0.0
    %751 = vmatpush.xpose.msra.mxu0 0.0
    %752 = vmatpush.xpose.msra.mxu0 %v735
    %753 = vmatmul.f32.gmra.mxu0 %v733
    %v754 = vpop.f32.mrf.mxu0
    %v755 = vadd.f32 0.0, %v754
    %756 = vdwg.mxu0
    %757 = vrot.lane.b32.xlu0 %v171, 104
    %v758 = vpop.permute.xlu0 %757
    %759 = vrot.lane.b32.xlu0 %v171, 72
    %v760 = vpop.permute.xlu0 %759
    %v761 = vsel %vm176, %v758, 0
    %v763 = vsel %vm176, %v760, 0
    %765 = vmatpush.xpose.msra.mxu0 0.0
    %766 = vmatpush.xpose.msra.mxu0 0.0
    %767 = vmatpush.xpose.msra.mxu0 0.0
    %768 = vmatpush.xpose.msra.mxu0 0.0
    %769 = vmatpush.xpose.msra.mxu0 0.0
    %770 = vmatpush.xpose.msra.mxu0 0.0
    %771 = vmatpush.xpose.msra.mxu0 0.0
    %772 = vmatpush.xpose.msra.mxu0 0.0
    %773 = vmatpush.xpose.msra.mxu0 0.0
    %774 = vmatpush.xpose.msra.mxu0 0.0
    %775 = vmatpush.xpose.msra.mxu0 0.0
    %776 = vmatpush.xpose.msra.mxu0 0.0
    %777 = vmatpush.xpose.msra.mxu0 0.0
    %778 = vmatpush.xpose.msra.mxu0 0.0
    %779 = vmatpush.xpose.msra.mxu0 0.0
    %780 = vmatpush.xpose.msra.mxu0 %v763
    %781 = vmatmul.f32.gmra.mxu0 %v761
    %v782 = vpop.f32.mrf.mxu0
    %v783 = vadd.f32 0.0, %v782
    %784 = vdwg.mxu0
    %v785 = vsel %vm176, %v755, -inf
    %786 = vmax.xlane.f32.xlu0 %v785
    %v787 = vpop.xlane.xlu0 %786
    %v788 = vsel %vm176, %v783, -inf
    %789 = vmax.xlane.f32.xlu0 %v788
    %v790 = vpop.xlane.xlu0 %789
    %v791 = vsub.f32 %v755, %v787
    %v792 = vsub.f32 %v783, %v790
    %v793 = vmul.f32 %v791, 1.442695
    %v794 = vpow.pop %v793
    %v795 = vmul.f32 %v792, 1.442695
    %v796 = vpow.pop %v795
    %v797 = vsel %vm176, %v794, 0.0
    %798 = vadd.xlane.f32.xlu0 %v797
    %v799 = vpop.xlane.xlu0 %798
    %v800 = vsel %vm176, %v796, 0.0
    %801 = vadd.xlane.f32.xlu0 %v800
    %v802 = vpop.xlane.xlu0 %801
    %v803 = vrcp.pop %v799
    %v804 = vmul.f32 %v799, %v803
    %v805 = vsub.f32 1.0, %v804
    %v806 = vmul.f32 %v803, %v805
    %v807 = vadd.f32 %v803, %v806
    %vm808 = vweird.f32 %v799
    %vm809 = vweird.f32 %v803
    %vm810 = vmor %vm808, %vm809
    %v811 = vsel %vm810, %v803, %v807
    %v812 = vand.u32 2147483647, %v799
    %vm813 = vcmp.eq.f32.partialorder %v812, 8.507059e+37
    %v814 = vand.u32 %v799, 2147483648
    %v815 = vor.u32 1.1754944e-38, %v814
    %v816 = vsel %vm813, %v815, %v811
    %v817 = vmul.f32 %v794, %v816
    %v818 = vrcp.pop %v802
    %v819 = vmul.f32 %v802, %v818
    %v820 = vsub.f32 1.0, %v819
    %v821 = vmul.f32 %v818, %v820
    %v822 = vadd.f32 %v818, %v821
    %vm823 = vweird.f32 %v802
    %vm824 = vweird.f32 %v818
    %vm825 = vmor %vm823, %vm824
    %v826 = vsel %vm825, %v818, %v822
    %v827 = vand.u32 2147483647, %v802
    %vm828 = vcmp.eq.f32.partialorder %v827, 8.507059e+37
    %v829 = vand.u32 %v802, 2147483648
    %v830 = vor.u32 1.1754944e-38, %v829
    %v831 = vsel %vm828, %v830, %v826
    %v832 = vmul.f32 %v796, %v831
    %833 = vrot.lane.b32.xlu0 %v168, 40
    %v834 = vpop.permute.xlu0 %833
    %v837 = vsel %vm176, %v817, 0
    %839 = vmatpush.msra.mxu0 0.0
    %840 = vmatpush.msra.mxu0 0.0
    %841 = vmatpush.msra.mxu0 0.0
    %842 = vmatpush.msra.mxu0 0.0
    %843 = vmatpush.msra.mxu0 0.0
    %844 = vmatpush.msra.mxu0 0.0
    %845 = vmatpush.msra.mxu0 0.0
    %846 = vmatpush.msra.mxu0 0.0
    %847 = vmatpush.msra.mxu0 0.0
    %848 = vmatpush.msra.mxu0 0.0
    %849 = vmatpush.msra.mxu0 0.0
    %850 = vmatpush.msra.mxu0 0.0
    %851 = vmatpush.msra.mxu0 0.0
    %852 = vmatpush.msra.mxu0 0.0
    %853 = vmatpush.msra.mxu0 0.0
    %854 = vmatpush.msra.mxu0 %v834
    %855 = vmatmul.f32.gmra.mxu0 %v837
    %v856 = vpop.f32.mrf.mxu0
    %v857 = vadd.f32 0.0, %v856
    %858 = vdwg.mxu0
    %859 = vrot.lane.b32.xlu0 %v171, 40
    %v860 = vpop.permute.xlu0 %859
    %v863 = vsel %vm176, %v832, 0
    %865 = vmatpush.msra.mxu0 0.0
    %866 = vmatpush.msra.mxu0 0.0
    %867 = vmatpush.msra.mxu0 0.0
    %868 = vmatpush.msra.mxu0 0.0
    %869 = vmatpush.msra.mxu0 0.0
    %870 = vmatpush.msra.mxu0 0.0
    %871 = vmatpush.msra.mxu0 0.0
    %872 = vmatpush.msra.mxu0 0.0
    %873 = vmatpush.msra.mxu0 0.0
    %874 = vmatpush.msra.mxu0 0.0
    %875 = vmatpush.msra.mxu0 0.0
    %876 = vmatpush.msra.mxu0 0.0
    %877 = vmatpush.msra.mxu0 0.0
    %878 = vmatpush.msra.mxu0 0.0
    %879 = vmatpush.msra.mxu0 0.0
    %880 = vmatpush.msra.mxu0 %v860
    %881 = vmatmul.f32.gmra.mxu0 %v863
    %v882 = vpop.f32.mrf.mxu0
    %v883 = vadd.f32 0.0, %v882
    %884 = vdwg.mxu0
    %v886 = vsel %vm176, %v857, 0
    %v889 = vsel %vm176, %v883, 0
    %891 = vmatpush.msra.mxu0 0.0
    %892 = vmatpush.msra.mxu0 0.0
    %893 = vmatpush.msra.mxu0 0.0
    %894 = vmatpush.msra.mxu0 0.0
    %895 = vmatpush.msra.mxu0 0.0
    %896 = vmatpush.msra.mxu0 0.0
    %897 = vmatpush.msra.mxu0 0.0
    %898 = vmatpush.msra.mxu0 0.0
    %899 = vmatpush.msra.mxu0 0.0
    %900 = vmatpush.msra.mxu0 0.0
    %901 = vmatpush.msra.mxu0 0.0
    %902 = vmatpush.msra.mxu0 0.0
    %903 = vmatpush.msra.mxu0 0.0
    %904 = vmatpush.msra.mxu0 0.0
    %905 = vmatpush.msra.mxu0 0.0
    %906 = vmatpush.msra.mxu0 %v139
    %907 = vmatmul.f32.gmra.mxu0 %v886
    %v908 = vpop.f32.mrf.mxu0
    %v909 = vadd.f32 0.0, %v908
    %910 = vmatmul.f32.gmra.mxu0 %v889
    %v911 = vpop.f32.mrf.mxu0
    %v912 = vadd.f32 0.0, %v911
    %913 = vdwg.mxu0
    %v914 = vadd.f32 %v727, %v909
    %v915 = vadd.f32 %v728, %v912
    %v916 = vld [vmem:[%s4] sm:$0x1]
    %v918 = vperm.slane %v916, 0
    %v920 = vadd.f32 %v914, %v918
    %v921 = vadd.f32 %v915, %v918
    %v922 = vadd.f32 %v129, %v920
    %v923 = vadd.f32 %v130, %v921
    %v924 = vld [vmem:[%s9] sm:$0x1]
    %v925 = vld [vmem:[%s10] sm:$0x1]
    %v926 = vsel %vm143, %v922, 0.0
    %927 = vadd.xlane.f32.xlu0 %v926
    %v928 = vpop.xlane.xlu0 %927
    %v929 = vsel %vm143, %v923, 0.0
    %930 = vadd.xlane.f32.xlu0 %v929
    %v931 = vpop.xlane.xlu0 %930
    %v932 = vrcp.pop 32.0
    %v933 = vmul.f32 32.0, %v932
    %v934 = vsub.f32 1.0, %v933
    %v935 = vmul.f32 %v932, %v934
    %v936 = vadd.f32 %v932, %v935
    %vm937 = vweird.f32 %v932
    %v938 = vsel %vm937, %v932, %v936
    %v939 = vmul.f32 %v928, %v938
    %v940 = vmul.f32 %v931, %v938
    %v941 = vsub.f32 %v922, %v939
    %v942 = vsub.f32 %v923, %v940
    %v943 = vmul.f32 %v941, %v941
    %v944 = vmul.f32 %v942, %v942
    %v945 = vsel %vm143, %v943, 0.0
    %946 = vadd.xlane.f32.xlu0 %v945
    %v947 = vpop.xlane.xlu0 %946
    %v948 = vsel %vm143, %v944, 0.0
    %949 = vadd.xlane.f32.xlu0 %v948
    %v950 = vpop.xlane.xlu0 %949
    %v951 = vmul.f32 %v947, %v938
    %v952 = vmul.f32 %v950, %v938
    %v953 = vadd.f32 %v951, 1e-05
    %v954 = vadd.f32 %v952, 1e-05
    %v955 = vrsqrt.pop %v953
    %v956 = vmul.f32 %v955, %v953
    %v957 = vmul.f32 %v956, %v955
    %v958 = vmul.f32 0.5, %v957
    %v959 = vsub.f32 1.5, %v958
    %v960 = vmul.f32 %v955, %v959
    %vm961 = vweird.f32 %v953
    %vm962 = vweird.f32 %v955
    %vm963 = vmor %vm961, %vm962
    %v964 = vsel %vm963, %v955, %v960
    %v965 = vrsqrt.pop %v954
    %v966 = vmul.f32 %v965, %v954
    %v967 = vmul.f32 %v966, %v965
    %v968 = vmul.f32 0.5, %v967
    %v969 = vsub.f32 1.5, %v968
    %v970 = vmul.f32 %v965, %v969
    %vm971 = vweird.f32 %v954
    %vm972 = vweird.f32 %v965
    %vm973 = vmor %vm971, %vm972
    %v974 = vsel %vm973, %v965, %v970
    %v975 = vmul.f32 %v941, %v964
    %v976 = vmul.f32 %v942, %v974
    %v978 = vperm.slane %v924, 0
    %v980 = vmul.f32 %v975, %v978
    %v981 = vmul.f32 %v976, %v978
    %v983 = vperm.slane %v925, 0
    %v985 = vadd.f32 %v980, %v983
    %v986 = vadd.f32 %v981, %v983
    %v987 = vld [vmem:[%s5] sm:$0xff]
    %v988 = vld [vmem:[%s5 + $0x8] sm:$0xff]
    %v989 = vld [vmem:[%s5 + $0x10] sm:$0xff]
    %v990 = vld [vmem:[%s5 + $0x18] sm:$0xff]
    %v991 = vld [vmem:[%s6] sm:$0x1]
    %v993 = vperm.slane %v991, 0
    %v996 = vsel %vm143, %v985, 0
    %v999 = vsel %vm143, %v986, 0
    %1001 = vmatpush.msra.mxu0 0.0
    %1002 = vmatpush.msra.mxu0 0.0
    %1003 = vmatpush.msra.mxu0 0.0
    %1004 = vmatpush.msra.mxu0 0.0
    %1005 = vmatpush.msra.mxu0 0.0
    %1006 = vmatpush.msra.mxu0 0.0
    %1007 = vmatpush.msra.mxu0 0.0
    %1008 = vmatpush.msra.mxu0 0.0
    %1009 = vmatpush.msra.mxu0 0.0
    %1010 = vmatpush.msra.mxu0 0.0
    %1011 = vmatpush.msra.mxu0 0.0
    %1012 = vmatpush.msra.mxu0 0.0
    %1013 = vmatpush.msra.mxu0 %v990
    %1014 = vmatpush.msra.mxu0 %v989
    %1015 = vmatpush.msra.mxu0 %v988
    %1016 = vmatpush.msra.mxu0 %v987
    %1017 = vmatmul.f32.gmra.mxu0 %v996
    %v1018 = vpop.f32.mrf.mxu0
    %v1019 = vadd.f32 %v993, %v1018
    %1020 = vmatmul.f32.gmra.mxu0 %v999
    %v1021 = vpop.f32.mrf.mxu0
    %v1022 = vadd.f32 %v993, %v1021
    %1023 = vdwg.mxu0
    %v1024 = vmax.f32 %v1019, 0.0
    %v1025 = vmax.f32 %v1022, 0.0
    %v1026 = vld [vmem:[%s7] sm:$0xff]
    %v1027 = vld [vmem:[%s7 + $0x8] sm:$0xff]
    %v1028 = vld [vmem:[%s7 + $0x10] sm:$0xff]
    %v1029 = vld [vmem:[%s7 + $0x18] sm:$0xff]
    %v1030 = vld [vmem:[%s7 + $0x20] sm:$0xff]
    %v1031 = vld [vmem:[%s7 + $0x28] sm:$0xff]
    %v1032 = vld [vmem:[%s7 + $0x30] sm:$0xff]
    %v1033 = vld [vmem:[%s7 + $0x38] sm:$0xff]
    %v1034 = vld [vmem:[#allocation7] sm:$0x1]
    %v1036 = vperm.slane %v1034, 0
    %vm1038 = vcmask 523264
    %v1040 = vsel %vm1038, %v1024, 0
    %v1043 = vsel %vm1038, %v1025, 0
    %1045 = vmatpush.msra.mxu0 0.0
    %1046 = vmatpush.msra.mxu0 0.0
    %1047 = vmatpush.msra.mxu0 0.0
    %1048 = vmatpush.msra.mxu0 0.0
    %1049 = vmatpush.msra.mxu0 0.0
    %1050 = vmatpush.msra.mxu0 0.0
    %1051 = vmatpush.msra.mxu0 0.0
    %1052 = vmatpush.msra.mxu0 0.0
    %1053 = vmatpush.msra.mxu0 %v1033
    %1054 = vmatpush.msra.mxu0 %v1032
    %1055 = vmatpush.msra.mxu0 %v1031
    %1056 = vmatpush.msra.mxu0 %v1030
    %1057 = vmatpush.msra.mxu0 %v1029
    %1058 = vmatpush.msra.mxu0 %v1028
    %1059 = vmatpush.msra.mxu0 %v1027
    %1060 = vmatpush.msra.mxu0 %v1026
    %1061 = vmatmul.f32.gmra.mxu0 %v1040
    %v1062 = vpop.f32.mrf.mxu0
    %v1063 = vadd.f32 %v1036, %v1062
    %1064 = vmatmul.f32.gmra.mxu0 %v1043
    %v1065 = vpop.f32.mrf.mxu0
    %v1066 = vadd.f32 %v1036, %v1065
    %1067 = vdwg.mxu0
    %v1068 = vadd.f32 %v985, %v1063
    %v1069 = vadd.f32 %v986, %v1066
    %v1070 = vld [vmem:[#allocation8] sm:$0x1]
    %v1071 = vld [vmem:[%s12] sm:$0x1]
    %v1072 = vsel %vm143, %v1068, 0.0
    %1073 = vadd.xlane.f32.xlu0 %v1072
    %v1074 = vpop.xlane.xlu0 %1073
    %v1075 = vsel %vm143, %v1069, 0.0
    %1076 = vadd.xlane.f32.xlu0 %v1075
    %v1077 = vpop.xlane.xlu0 %1076
    %v1078 = vmul.f32 %v1074, %v938
    %v1079 = vmul.f32 %v1077, %v938
    %v1080 = vsub.f32 %v1068, %v1078
    %v1081 = vsub.f32 %v1069, %v1079
    %v1082 = vmul.f32 %v1080, %v1080
    %v1083 = vmul.f32 %v1081, %v1081
    %v1084 = vsel %vm143, %v1082, 0.0
    %1085 = vadd.xlane.f32.xlu0 %v1084
    %v1086 = vpop.xlane.xlu0 %1085
    %v1087 = vsel %vm143, %v1083, 0.0
    %1088 = vadd.xlane.f32.xlu0 %v1087
    %v1089 = vpop.xlane.xlu0 %1088
    %v1090 = vmul.f32 %v1086, %v938
    %v1091 = vmul.f32 %v1089, %v938
    %v1092 = vadd.f32 %v1090, 1e-05
    %v1093 = vadd.f32 %v1091, 1e-05
    %v1094 = vrsqrt.pop %v1092
    %v1095 = vmul.f32 %v1094, %v1092
    %v1096 = vmul.f32 %v1095, %v1094
    %v1097 = vmul.f32 0.5, %v1096
    %v1098 = vsub.f32 1.5, %v1097
    %v1099 = vmul.f32 %v1094, %v1098
    %vm1100 = vweird.f32 %v1092
    %vm1101 = vweird.f32 %v1094
    %vm1102 = vmor %vm1100, %vm1101
    %v1103 = vsel %vm1102, %v1094, %v1099
    %v1104 = vrsqrt.pop %v1093
    %v1105 = vmul.f32 %v1104, %v1093
    %v1106 = vmul.f32 %v1105, %v1104
    %v1107 = vmul.f32 0.5, %v1106
    %v1108 = vsub.f32 1.5, %v1107
    %v1109 = vmul.f32 %v1104, %v1108
    %vm1110 = vweird.f32 %v1093
    %vm1111 = vweird.f32 %v1104
    %vm1112 = vmor %vm1110, %vm1111
    %v1113 = vsel %vm1112, %v1104, %v1109
    %v1114 = vmul.f32 %v1080, %v1103
    %v1115 = vmul.f32 %v1081, %v1113
    %v1117 = vperm.slane %v1070, 0
    %v1119 = vmul.f32 %v1114, %v1117
    %v1120 = vmul.f32 %v1115, %v1117
    %v1122 = vperm.slane %v1071, 0
    %v1124 = vadd.f32 %v1119, %v1122
    %v1125 = vadd.f32 %v1120, %v1122
    %s1126 = scalar_lea.vmem %s1, 32
    %v1127 = vld [vmem:[%s1126] sm:$0xff]
    %v1128 = vld [vmem:[%s1126 + $0x8] sm:$0xff]
    %v1129 = vld [vmem:[%s1126 + $0x10] sm:$0xff]
    %v1130 = vld [vmem:[%s1126 + $0x18] sm:$0xff]
    %s1131 = scalar_lea.vmem [#allocation5], 1
    %v1132 = vld [vmem:[%s1131] sm:$0x1]
    %s1133 = scalar_lea.vmem %s3, 32
    %v1134 = vld [vmem:[%s1133] sm:$0xff]
    %v1135 = vld [vmem:[%s1133 + $0x8] sm:$0xff]
    %v1136 = vld [vmem:[%s1133 + $0x10] sm:$0xff]
    %v1137 = vld [vmem:[%s1133 + $0x18] sm:$0xff]
    %v1139 = vperm.slane %v1132, 0
    %v1142 = vsel %vm143, %v1124, 0
    %v1145 = vsel %vm143, %v1125, 0
    %1147 = vmatpush.msra.mxu0 0.0
    %1148 = vmatpush.msra.mxu0 0.0
    %1149 = vmatpush.msra.mxu0 0.0
    %1150 = vmatpush.msra.mxu0 0.0
    %1151 = vmatpush.msra.mxu0 0.0
    %1152 = vmatpush.msra.mxu0 0.0
    %1153 = vmatpush.msra.mxu0 0.0
    %1154 = vmatpush.msra.mxu0 0.0
    %1155 = vmatpush.msra.mxu0 0.0
    %1156 = vmatpush.msra.mxu0 0.0
    %1157 = vmatpush.msra.mxu0 0.0
    %1158 = vmatpush.msra.mxu0 0.0
    %1159 = vmatpush.msra.mxu0 %v1130
    %1160 = vmatpush.msra.mxu0 %v1129
    %1161 = vmatpush.msra.mxu0 %v1128
    %1162 = vmatpush.msra.mxu0 %v1127
    %1163 = vmatmul.f32.gmra.mxu0 %v1142
    %v1164 = vpop.f32.mrf.mxu0
    %v1165 = vadd.f32 %v1139, %v1164
    %1166 = vmatmul.f32.gmra.mxu0 %v1145
    %v1167 = vpop.f32.mrf.mxu0
    %v1168 = vadd.f32 %v1139, %v1167
    %1169 = vdwg.mxu0
    %1171 = vrot.lane.b32.xlu0 %v1165, 96
    %v1172 = vpop.permute.xlu0 %1171
    %v1173 = vsel %vm176, %v1165, 0
    %v1175 = vsel %vm176, %v1172, 0
    %1177 = vmatpush.xpose.msra.mxu0 0.0
    %1178 = vmatpush.xpose.msra.mxu0 0.0
    %1179 = vmatpush.xpose.msra.mxu0 0.0
    %1180 = vmatpush.xpose.msra.mxu0 0.0
    %1181 = vmatpush.xpose.msra.mxu0 0.0
    %1182 = vmatpush.xpose.msra.mxu0 0.0
    %1183 = vmatpush.xpose.msra.mxu0 0.0
    %1184 = vmatpush.xpose.msra.mxu0 0.0
    %1185 = vmatpush.xpose.msra.mxu0 0.0
    %1186 = vmatpush.xpose.msra.mxu0 0.0
    %1187 = vmatpush.xpose.msra.mxu0 0.0
    %1188 = vmatpush.xpose.msra.mxu0 0.0
    %1189 = vmatpush.xpose.msra.mxu0 0.0
    %1190 = vmatpush.xpose.msra.mxu0 0.0
    %1191 = vmatpush.xpose.msra.mxu0 0.0
    %1192 = vmatpush.xpose.msra.mxu0 %v1175
    %1193 = vmatmul.f32.gmra.mxu0 %v1173
    %v1194 = vpop.f32.mrf.mxu0
    %v1195 = vadd.f32 0.0, %v1194
    %1196 = vdwg.mxu0
    %1198 = vrot.lane.b32.xlu0 %v1168, 96
    %v1199 = vpop.permute.xlu0 %1198
    %v1200 = vsel %vm176, %v1168, 0
    %v1202 = vsel %vm176, %v1199, 0
    %1204 = vmatpush.xpose.msra.mxu0 0.0
    %1205 = vmatpush.xpose.msra.mxu0 0.0
    %1206 = vmatpush.xpose.msra.mxu0 0.0
    %1207 = vmatpush.xpose.msra.mxu0 0.0
    %1208 = vmatpush.xpose.msra.mxu0 0.0
    %1209 = vmatpush.xpose.msra.mxu0 0.0
    %1210 = vmatpush.xpose.msra.mxu0 0.0
    %1211 = vmatpush.xpose.msra.mxu0 0.0
    %1212 = vmatpush.xpose.msra.mxu0 0.0
    %1213 = vmatpush.xpose.msra.mxu0 0.0
    %1214 = vmatpush.xpose.msra.mxu0 0.0
    %1215 = vmatpush.xpose.msra.mxu0 0.0
    %1216 = vmatpush.xpose.msra.mxu0 0.0
    %1217 = vmatpush.xpose.msra.mxu0 0.0
    %1218 = vmatpush.xpose.msra.mxu0 0.0
    %1219 = vmatpush.xpose.msra.mxu0 %v1202
    %1220 = vmatmul.f32.gmra.mxu0 %v1200
    %v1221 = vpop.f32.mrf.mxu0
    %v1222 = vadd.f32 0.0, %v1221
    %1223 = vdwg.mxu0
    %v1224 = vsel %vm176, %v1195, -inf
    %1225 = vmax.xlane.f32.xlu0 %v1224
    %v1226 = vpop.xlane.xlu0 %1225
    %v1227 = vsel %vm176, %v1222, -inf
    %1228 = vmax.xlane.f32.xlu0 %v1227
    %v1229 = vpop.xlane.xlu0 %1228
    %v1230 = vsub.f32 %v1195, %v1226
    %v1231 = vsub.f32 %v1222, %v1229
    %v1232 = vmul.f32 %v1230, 1.442695
    %v1233 = vpow.pop %v1232
    %v1234 = vmul.f32 %v1231, 1.442695
    %v1235 = vpow.pop %v1234
    %v1236 = vsel %vm176, %v1233, 0.0
    %1237 = vadd.xlane.f32.xlu0 %v1236
    %v1238 = vpop.xlane.xlu0 %1237
    %v1239 = vsel %vm176, %v1235, 0.0
    %1240 = vadd.xlane.f32.xlu0 %v1239
    %v1241 = vpop.xlane.xlu0 %1240
    %v1242 = vrcp.pop %v1238
    %v1243 = vmul.f32 %v1238, %v1242
    %v1244 = vsub.f32 1.0, %v1243
    %v1245 = vmul.f32 %v1242, %v1244
    %v1246 = vadd.f32 %v1242, %v1245
    %vm1247 = vweird.f32 %v1238
    %vm1248 = vweird.f32 %v1242
    %vm1249 = vmor %vm1247, %vm1248
    %v1250 = vsel %vm1249, %v1242, %v1246
    %v1251 = vand.u32 2147483647, %v1238
    %vm1252 = vcmp.eq.f32.partialorder %v1251, 8.507059e+37
    %v1253 = vand.u32 %v1238, 2147483648
    %v1254 = vor.u32 1.1754944e-38, %v1253
    %v1255 = vsel %vm1252, %v1254, %v1250
    %v1256 = vmul.f32 %v1233, %v1255
    %v1257 = vrcp.pop %v1241
    %v1258 = vmul.f32 %v1241, %v1257
    %v1259 = vsub.f32 1.0, %v1258
    %v1260 = vmul.f32 %v1257, %v1259
    %v1261 = vadd.f32 %v1257, %v1260
    %vm1262 = vweird.f32 %v1241
    %vm1263 = vweird.f32 %v1257
    %vm1264 = vmor %vm1262, %vm1263
    %v1265 = vsel %vm1264, %v1257, %v1261
    %v1266 = vand.u32 2147483647, %v1241
    %vm1267 = vcmp.eq.f32.partialorder %v1266, 8.507059e+37
    %v1268 = vand.u32 %v1241, 2147483648
    %v1269 = vor.u32 1.1754944e-38, %v1268
    %v1270 = vsel %vm1267, %v1269, %v1265
    %v1271 = vmul.f32 %v1235, %v1270
    %1272 = vrot.lane.b32.xlu0 %v1165, 64
    %v1273 = vpop.permute.xlu0 %1272
    %v1276 = vsel %vm176, %v1256, 0
    %1278 = vmatpush.msra.mxu0 0.0
    %1279 = vmatpush.msra.mxu0 0.0
    %1280 = vmatpush.msra.mxu0 0.0
    %1281 = vmatpush.msra.mxu0 0.0
    %1282 = vmatpush.msra.mxu0 0.0
    %1283 = vmatpush.msra.mxu0 0.0
    %1284 = vmatpush.msra.mxu0 0.0
    %1285 = vmatpush.msra.mxu0 0.0
    %1286 = vmatpush.msra.mxu0 0.0
    %1287 = vmatpush.msra.mxu0 0.0
    %1288 = vmatpush.msra.mxu0 0.0
    %1289 = vmatpush.msra.mxu0 0.0
    %1290 = vmatpush.msra.mxu0 0.0
    %1291 = vmatpush.msra.mxu0 0.0
    %1292 = vmatpush.msra.mxu0 0.0
    %1293 = vmatpush.msra.mxu0 %v1273
    %1294 = vmatmul.f32.gmra.mxu0 %v1276
    %v1295 = vpop.f32.mrf.mxu0
    %v1296 = vadd.f32 0.0, %v1295
    %1297 = vdwg.mxu0
    %1298 = vrot.lane.b32.xlu0 %v1168, 64
    %v1299 = vpop.permute.xlu0 %1298
    %v1302 = vsel %vm176, %v1271, 0
    %1304 = vmatpush.msra.mxu0 0.0
    %1305 = vmatpush.msra.mxu0 0.0
    %1306 = vmatpush.msra.mxu0 0.0
    %1307 = vmatpush.msra.mxu0 0.0
    %1308 = vmatpush.msra.mxu0 0.0
    %1309 = vmatpush.msra.mxu0 0.0
    %1310 = vmatpush.msra.mxu0 0.0
    %1311 = vmatpush.msra.mxu0 0.0
    %1312 = vmatpush.msra.mxu0 0.0
    %1313 = vmatpush.msra.mxu0 0.0
    %1314 = vmatpush.msra.mxu0 0.0
    %1315 = vmatpush.msra.mxu0 0.0
    %1316 = vmatpush.msra.mxu0 0.0
    %1317 = vmatpush.msra.mxu0 0.0
    %1318 = vmatpush.msra.mxu0 0.0
    %1319 = vmatpush.msra.mxu0 %v1299
    %1320 = vmatmul.f32.gmra.mxu0 %v1302
    %v1321 = vpop.f32.mrf.mxu0
    %v1322 = vadd.f32 0.0, %v1321
    %1323 = vdwg.mxu0
    %1324 = vrot.lane.b32.xlu0 %v1165, 120
    %v1325 = vpop.permute.xlu0 %1324
    %1326 = vrot.lane.b32.xlu0 %v1165, 88
    %v1327 = vpop.permute.xlu0 %1326
    %v1328 = vsel %vm176, %v1325, 0
    %v1330 = vsel %vm176, %v1327, 0
    %1332 = vmatpush.xpose.msra.mxu0 0.0
    %1333 = vmatpush.xpose.msra.mxu0 0.0
    %1334 = vmatpush.xpose.msra.mxu0 0.0
    %1335 = vmatpush.xpose.msra.mxu0 0.0
    %1336 = vmatpush.xpose.msra.mxu0 0.0
    %1337 = vmatpush.xpose.msra.mxu0 0.0
    %1338 = vmatpush.xpose.msra.mxu0 0.0
    %1339 = vmatpush.xpose.msra.mxu0 0.0
    %1340 = vmatpush.xpose.msra.mxu0 0.0
    %1341 = vmatpush.xpose.msra.mxu0 0.0
    %1342 = vmatpush.xpose.msra.mxu0 0.0
    %1343 = vmatpush.xpose.msra.mxu0 0.0
    %1344 = vmatpush.xpose.msra.mxu0 0.0
    %1345 = vmatpush.xpose.msra.mxu0 0.0
    %1346 = vmatpush.xpose.msra.mxu0 0.0
    %1347 = vmatpush.xpose.msra.mxu0 %v1330
    %1348 = vmatmul.f32.gmra.mxu0 %v1328
    %v1349 = vpop.f32.mrf.mxu0
    %v1350 = vadd.f32 0.0, %v1349
    %1351 = vdwg.mxu0
    %1352 = vrot.lane.b32.xlu0 %v1168, 120
    %v1353 = vpop.permute.xlu0 %1352
    %1354 = vrot.lane.b32.xlu0 %v1168, 88
    %v1355 = vpop.permute.xlu0 %1354
    %v1356 = vsel %vm176, %v1353, 0
    %v1358 = vsel %vm176, %v1355, 0
    %1360 = vmatpush.xpose.msra.mxu0 0.0
    %1361 = vmatpush.xpose.msra.mxu0 0.0
    %1362 = vmatpush.xpose.msra.mxu0 0.0
    %1363 = vmatpush.xpose.msra.mxu0 0.0
    %1364 = vmatpush.xpose.msra.mxu0 0.0
    %1365 = vmatpush.xpose.msra.mxu0 0.0
    %1366 = vmatpush.xpose.msra.mxu0 0.0
    %1367 = vmatpush.xpose.msra.mxu0 0.0
    %1368 = vmatpush.xpose.msra.mxu0 0.0
    %1369 = vmatpush.xpose.msra.mxu0 0.0
    %1370 = vmatpush.xpose.msra.mxu0 0.0
    %1371 = vmatpush.xpose.msra.mxu0 0.0
    %1372 = vmatpush.xpose.msra.mxu0 0.0
    %1373 = vmatpush.xpose.msra.mxu0 0.0
    %1374 = vmatpush.xpose.msra.mxu0 0.0
    %1375 = vmatpush.xpose.msra.mxu0 %v1358
    %1376 = vmatmul.f32.gmra.mxu0 %v1356
    %v1377 = vpop.f32.mrf.mxu0
    %v1378 = vadd.f32 0.0, %v1377
    %1379 = vdwg.mxu0
    %v1380 = vsel %vm176, %v1350, -inf
    %1381 = vmax.xlane.f32.xlu0 %v1380
    %v1382 = vpop.xlane.xlu0 %1381
    %v1383 = vsel %vm176, %v1378, -inf
    %1384 = vmax.xlane.f32.xlu0 %v1383
    %v1385 = vpop.xlane.xlu0 %1384
    %v1386 = vsub.f32 %v1350, %v1382
    %v1387 = vsub.f32 %v1378, %v1385
    %v1388 = vmul.f32 %v1386, 1.442695
    %v1389 = vpow.pop %v1388
    %v1390 = vmul.f32 %v1387, 1.442695
    %v1391 = vpow.pop %v1390
    %v1392 = vsel %vm176, %v1389, 0.0
    %1393 = vadd.xlane.f32.xlu0 %v1392
    %v1394 = vpop.xlane.xlu0 %1393
    %v1395 = vsel %vm176, %v1391, 0.0
    %1396 = vadd.xlane.f32.xlu0 %v1395
    %v1397 = vpop.xlane.xlu0 %1396
    %v1398 = vrcp.pop %v1394
    %v1399 = vmul.f32 %v1394, %v1398
    %v1400 = vsub.f32 1.0, %v1399
    %v1401 = vmul.f32 %v1398, %v1400
    %v1402 = vadd.f32 %v1398, %v1401
    %vm1403 = vweird.f32 %v1394
    %vm1404 = vweird.f32 %v1398
    %vm1405 = vmor %vm1403, %vm1404
    %v1406 = vsel %vm1405, %v1398, %v1402
    %v1407 = vand.u32 2147483647, %v1394
    %vm1408 = vcmp.eq.f32.partialorder %v1407, 8.507059e+37
    %v1409 = vand.u32 %v1394, 2147483648
    %v1410 = vor.u32 1.1754944e-38, %v1409
    %v1411 = vsel %vm1408, %v1410, %v1406
    %v1412 = vmul.f32 %v1389, %v1411
    %v1413 = vrcp.pop %v1397
    %v1414 = vmul.f32 %v1397, %v1413
    %v1415 = vsub.f32 1.0, %v1414
    %v1416 = vmul.f32 %v1413, %v1415
    %v1417 = vadd.f32 %v1413, %v1416
    %vm1418 = vweird.f32 %v1397
    %vm1419 = vweird.f32 %v1413
    %vm1420 = vmor %vm1418, %vm1419
    %v1421 = vsel %vm1420, %v1413, %v1417
    %v1422 = vand.u32 2147483647, %v1397
    %vm1423 = vcmp.eq.f32.partialorder %v1422, 8.507059e+37
    %v1424 = vand.u32 %v1397, 2147483648
    %v1425 = vor.u32 1.1754944e-38, %v1424
    %v1426 = vsel %vm1423, %v1425, %v1421
    %v1427 = vmul.f32 %v1391, %v1426
    %1428 = vrot.lane.b32.xlu0 %v1165, 56
    %v1429 = vpop.permute.xlu0 %1428
    %v1432 = vsel %vm176, %v1412, 0
    %1434 = vmatpush.msra.mxu0 0.0
    %1435 = vmatpush.msra.mxu0 0.0
    %1436 = vmatpush.msra.mxu0 0.0
    %1437 = vmatpush.msra.mxu0 0.0
    %1438 = vmatpush.msra.mxu0 0.0
    %1439 = vmatpush.msra.mxu0 0.0
    %1440 = vmatpush.msra.mxu0 0.0
    %1441 = vmatpush.msra.mxu0 0.0
    %1442 = vmatpush.msra.mxu0 0.0
    %1443 = vmatpush.msra.mxu0 0.0
    %1444 = vmatpush.msra.mxu0 0.0
    %1445 = vmatpush.msra.mxu0 0.0
    %1446 = vmatpush.msra.mxu0 0.0
    %1447 = vmatpush.msra.mxu0 0.0
    %1448 = vmatpush.msra.mxu0 0.0
    %1449 = vmatpush.msra.mxu0 %v1429
    %1450 = vmatmul.f32.gmra.mxu0 %v1432
    %v1451 = vpop.f32.mrf.mxu0
    %v1452 = vadd.f32 0.0, %v1451
    %1453 = vdwg.mxu0
    %1454 = vrot.lane.b32.xlu0 %v1168, 56
    %v1455 = vpop.permute.xlu0 %1454
    %v1458 = vsel %vm176, %v1427, 0
    %1460 = vmatpush.msra.mxu0 0.0
    %1461 = vmatpush.msra.mxu0 0.0
    %1462 = vmatpush.msra.mxu0 0.0
    %1463 = vmatpush.msra.mxu0 0.0
    %1464 = vmatpush.msra.mxu0 0.0
    %1465 = vmatpush.msra.mxu0 0.0
    %1466 = vmatpush.msra.mxu0 0.0
    %1467 = vmatpush.msra.mxu0 0.0
    %1468 = vmatpush.msra.mxu0 0.0
    %1469 = vmatpush.msra.mxu0 0.0
    %1470 = vmatpush.msra.mxu0 0.0
    %1471 = vmatpush.msra.mxu0 0.0
    %1472 = vmatpush.msra.mxu0 0.0
    %1473 = vmatpush.msra.mxu0 0.0
    %1474 = vmatpush.msra.mxu0 0.0
    %1475 = vmatpush.msra.mxu0 %v1455
    %1476 = vmatmul.f32.gmra.mxu0 %v1458
    %v1477 = vpop.f32.mrf.mxu0
    %v1478 = vadd.f32 0.0, %v1477
    %1479 = vdwg.mxu0
    %v1481 = vsel %vm176, %v1452, 0
    %v1484 = vsel %vm176, %v1478, 0
    %1486 = vmatpush.msra.mxu0 0.0
    %1487 = vmatpush.msra.mxu0 0.0
    %1488 = vmatpush.msra.mxu0 0.0
    %1489 = vmatpush.msra.mxu0 0.0
    %1490 = vmatpush.msra.mxu0 0.0
    %1491 = vmatpush.msra.mxu0 0.0
    %1492 = vmatpush.msra.mxu0 0.0
    %1493 = vmatpush.msra.mxu0 0.0
    %1494 = vmatpush.msra.mxu0 0.0
    %1495 = vmatpush.msra.mxu0 0.0
    %1496 = vmatpush.msra.mxu0 0.0
    %1497 = vmatpush.msra.mxu0 0.0
    %1498 = vmatpush.msra.mxu0 0.0
    %1499 = vmatpush.msra.mxu0 0.0
    %1500 = vmatpush.msra.mxu0 0.0
    %1501 = vmatpush.msra.mxu0 %v1135
    %1502 = vmatmul.f32.gmra.mxu0 %v1481
    %v1503 = vpop.f32.mrf.mxu0
    %v1504 = vadd.f32 0.0, %v1503
    %1505 = vmatmul.f32.gmra.mxu0 %v1484
    %v1506 = vpop.f32.mrf.mxu0
    %v1507 = vadd.f32 0.0, %v1506
    %1508 = vdwg.mxu0
    %v1510 = vsel %vm176, %v1296, 0
    %v1513 = vsel %vm176, %v1322, 0
    %1515 = vmatpush.msra.mxu0 0.0
    %1516 = vmatpush.msra.mxu0 0.0
    %1517 = vmatpush.msra.mxu0 0.0
    %1518 = vmatpush.msra.mxu0 0.0
    %1519 = vmatpush.msra.mxu0 0.0
    %1520 = vmatpush.msra.mxu0 0.0
    %1521 = vmatpush.msra.mxu0 0.0
    %1522 = vmatpush.msra.mxu0 0.0
    %1523 = vmatpush.msra.mxu0 0.0
    %1524 = vmatpush.msra.mxu0 0.0
    %1525 = vmatpush.msra.mxu0 0.0
    %1526 = vmatpush.msra.mxu0 0.0
    %1527 = vmatpush.msra.mxu0 0.0
    %1528 = vmatpush.msra.mxu0 0.0
    %1529 = vmatpush.msra.mxu0 0.0
    %1530 = vmatpush.msra.mxu0 %v1134
    %1531 = vmatmul.f32.gmra.mxu0 %v1510
    %v1532 = vpop.f32.mrf.mxu0
    %v1533 = vadd.f32 %v1504, %v1532
    %1534 = vmatmul.f32.gmra.mxu0 %v1513
    %v1535 = vpop.f32.mrf.mxu0
    %v1536 = vadd.f32 %v1507, %v1535
    %1537 = vdwg.mxu0
    %1538 = vrot.lane.b32.xlu0 %v1165, 112
    %v1539 = vpop.permute.xlu0 %1538
    %1540 = vrot.lane.b32.xlu0 %v1165, 80
    %v1541 = vpop.permute.xlu0 %1540
    %v1542 = vsel %vm176, %v1539, 0
    %v1544 = vsel %vm176, %v1541, 0
    %1546 = vmatpush.xpose.msra.mxu0 0.0
    %1547 = vmatpush.xpose.msra.mxu0 0.0
    %1548 = vmatpush.xpose.msra.mxu0 0.0
    %1549 = vmatpush.xpose.msra.mxu0 0.0
    %1550 = vmatpush.xpose.msra.mxu0 0.0
    %1551 = vmatpush.xpose.msra.mxu0 0.0
    %1552 = vmatpush.xpose.msra.mxu0 0.0
    %1553 = vmatpush.xpose.msra.mxu0 0.0
    %1554 = vmatpush.xpose.msra.mxu0 0.0
    %1555 = vmatpush.xpose.msra.mxu0 0.0
    %1556 = vmatpush.xpose.msra.mxu0 0.0
    %1557 = vmatpush.xpose.msra.mxu0 0.0
    %1558 = vmatpush.xpose.msra.mxu0 0.0
    %1559 = vmatpush.xpose.msra.mxu0 0.0
    %1560 = vmatpush.xpose.msra.mxu0 0.0
    %1561 = vmatpush.xpose.msra.mxu0 %v1544
    %1562 = vmatmul.f32.gmra.mxu0 %v1542
    %v1563 = vpop.f32.mrf.mxu0
    %v1564 = vadd.f32 0.0, %v1563
    %1565 = vdwg.mxu0
    %1566 = vrot.lane.b32.xlu0 %v1168, 112
    %v1567 = vpop.permute.xlu0 %1566
    %1568 = vrot.lane.b32.xlu0 %v1168, 80
    %v1569 = vpop.permute.xlu0 %1568
    %v1570 = vsel %vm176, %v1567, 0
    %v1572 = vsel %vm176, %v1569, 0
    %1574 = vmatpush.xpose.msra.mxu0 0.0
    %1575 = vmatpush.xpose.msra.mxu0 0.0
    %1576 = vmatpush.xpose.msra.mxu0 0.0
    %1577 = vmatpush.xpose.msra.mxu0 0.0
    %1578 = vmatpush.xpose.msra.mxu0 0.0
    %1579 = vmatpush.xpose.msra.mxu0 0.0
    %1580 = vmatpush.xpose.msra.mxu0 0.0
    %1581 = vmatpush.xpose.msra.mxu0 0.0
    %1582 = vmatpush.xpose.msra.mxu0 0.0
    %1583 = vmatpush.xpose.msra.mxu0 0.0
    %1584 = vmatpush.xpose.msra.mxu0 0.0
    %1585 = vmatpush.xpose.msra.mxu0 0.0
    %1586 = vmatpush.xpose.msra.mxu0 0.0
    %1587 = vmatpush.xpose.msra.mxu0 0.0
    %1588 = vmatpush.xpose.msra.mxu0 0.0
    %1589 = vmatpush.xpose.msra.mxu0 %v1572
    %1590 = vmatmul.f32.gmra.mxu0 %v1570
    %v1591 = vpop.f32.mrf.mxu0
    %v1592 = vadd.f32 0.0, %v1591
    %1593 = vdwg.mxu0
    %v1594 = vsel %vm176, %v1564, -inf
    %1595 = vmax.xlane.f32.xlu0 %v1594
    %v1596 = vpop.xlane.xlu0 %1595
    %v1597 = vsel %vm176, %v1592, -inf
    %1598 = vmax.xlane.f32.xlu0 %v1597
    %v1599 = vpop.xlane.xlu0 %1598
    %v1600 = vsub.f32 %v1564, %v1596
    %v1601 = vsub.f32 %v1592, %v1599
    %v1602 = vmul.f32 %v1600, 1.442695
    %v1603 = vpow.pop %v1602
    %v1604 = vmul.f32 %v1601, 1.442695
    %v1605 = vpow.pop %v1604
    %v1606 = vsel %vm176, %v1603, 0.0
    %1607 = vadd.xlane.f32.xlu0 %v1606
    %v1608 = vpop.xlane.xlu0 %1607
    %v1609 = vsel %vm176, %v1605, 0.0
    %1610 = vadd.xlane.f32.xlu0 %v1609
    %v1611 = vpop.xlane.xlu0 %1610
    %v1612 = vrcp.pop %v1608
    %v1613 = vmul.f32 %v1608, %v1612
    %v1614 = vsub.f32 1.0, %v1613
    %v1615 = vmul.f32 %v1612, %v1614
    %v1616 = vadd.f32 %v1612, %v1615
    %vm1617 = vweird.f32 %v1608
    %vm1618 = vweird.f32 %v1612
    %vm1619 = vmor %vm1617, %vm1618
    %v1620 = vsel %vm1619, %v1612, %v1616
    %v1621 = vand.u32 2147483647, %v1608
    %vm1622 = vcmp.eq.f32.partialorder %v1621, 8.507059e+37
    %v1623 = vand.u32 %v1608, 2147483648
    %v1624 = vor.u32 1.1754944e-38, %v1623
    %v1625 = vsel %vm1622, %v1624, %v1620
    %v1626 = vmul.f32 %v1603, %v1625
    %v1627 = vrcp.pop %v1611
    %v1628 = vmul.f32 %v1611, %v1627
    %v1629 = vsub.f32 1.0, %v1628
    %v1630 = vmul.f32 %v1627, %v1629
    %v1631 = vadd.f32 %v1627, %v1630
    %vm1632 = vweird.f32 %v1611
    %vm1633 = vweird.f32 %v1627
    %vm1634 = vmor %vm1632, %vm1633
    %v1635 = vsel %vm1634, %v1627, %v1631
    %v1636 = vand.u32 2147483647, %v1611
    %vm1637 = vcmp.eq.f32.partialorder %v1636, 8.507059e+37
    %v1638 = vand.u32 %v1611, 2147483648
    %v1639 = vor.u32 1.1754944e-38, %v1638
    %v1640 = vsel %vm1637, %v1639, %v1635
    %v1641 = vmul.f32 %v1605, %v1640
    %1642 = vrot.lane.b32.xlu0 %v1165, 48
    %v1643 = vpop.permute.xlu0 %1642
    %v1646 = vsel %vm176, %v1626, 0
    %1648 = vmatpush.msra.mxu0 0.0
    %1649 = vmatpush.msra.mxu0 0.0
    %1650 = vmatpush.msra.mxu0 0.0
    %1651 = vmatpush.msra.mxu0 0.0
    %1652 = vmatpush.msra.mxu0 0.0
    %1653 = vmatpush.msra.mxu0 0.0
    %1654 = vmatpush.msra.mxu0 0.0
    %1655 = vmatpush.msra.mxu0 0.0
    %1656 = vmatpush.msra.mxu0 0.0
    %1657 = vmatpush.msra.mxu0 0.0
    %1658 = vmatpush.msra.mxu0 0.0
    %1659 = vmatpush.msra.mxu0 0.0
    %1660 = vmatpush.msra.mxu0 0.0
    %1661 = vmatpush.msra.mxu0 0.0
    %1662 = vmatpush.msra.mxu0 0.0
    %1663 = vmatpush.msra.mxu0 %v1643
    %1664 = vmatmul.f32.gmra.mxu0 %v1646
    %v1665 = vpop.f32.mrf.mxu0
    %v1666 = vadd.f32 0.0, %v1665
    %1667 = vdwg.mxu0
    %1668 = vrot.lane.b32.xlu0 %v1168, 48
    %v1669 = vpop.permute.xlu0 %1668
    %v1672 = vsel %vm176, %v1641, 0
    %1674 = vmatpush.msra.mxu0 0.0
    %1675 = vmatpush.msra.mxu0 0.0
    %1676 = vmatpush.msra.mxu0 0.0
    %1677 = vmatpush.msra.mxu0 0.0
    %1678 = vmatpush.msra.mxu0 0.0
    %1679 = vmatpush.msra.mxu0 0.0
    %1680 = vmatpush.msra.mxu0 0.0
    %1681 = vmatpush.msra.mxu0 0.0
    %1682 = vmatpush.msra.mxu0 0.0
    %1683 = vmatpush.msra.mxu0 0.0
    %1684 = vmatpush.msra.mxu0 0.0
    %1685 = vmatpush.msra.mxu0 0.0
    %1686 = vmatpush.msra.mxu0 0.0
    %1687 = vmatpush.msra.mxu0 0.0
    %1688 = vmatpush.msra.mxu0 0.0
    %1689 = vmatpush.msra.mxu0 %v1669
    %1690 = vmatmul.f32.gmra.mxu0 %v1672
    %v1691 = vpop.f32.mrf.mxu0
    %v1692 = vadd.f32 0.0, %v1691
    %1693 = vdwg.mxu0
    %v1695 = vsel %vm176, %v1666, 0
    %v1698 = vsel %vm176, %v1692, 0
    %1700 = vmatpush.msra.mxu0 0.0
    %1701 = vmatpush.msra.mxu0 0.0
    %1702 = vmatpush.msra.mxu0 0.0
    %1703 = vmatpush.msra.mxu0 0.0
    %1704 = vmatpush.msra.mxu0 0.0
    %1705 = vmatpush.msra.mxu0 0.0
    %1706 = vmatpush.msra.mxu0 0.0
    %1707 = vmatpush.msra.mxu0 0.0
    %1708 = vmatpush.msra.mxu0 0.0
    %1709 = vmatpush.msra.mxu0 0.0
    %1710 = vmatpush.msra.mxu0 0.0
    %1711 = vmatpush.msra.mxu0 0.0
    %1712 = vmatpush.msra.mxu0 0.0
    %1713 = vmatpush.msra.mxu0 0.0
    %1714 = vmatpush.msra.mxu0 0.0
    %1715 = vmatpush.msra.mxu0 %v1136
    %1716 = vmatmul.f32.gmra.mxu0 %v1695
    %v1717 = vpop.f32.mrf.mxu0
    %v1718 = vadd.f32 0.0, %v1717
    %1719 = vmatmul.f32.gmra.mxu0 %v1698
    %v1720 = vpop.f32.mrf.mxu0
    %v1721 = vadd.f32 0.0, %v1720
    %1722 = vdwg.mxu0
    %v1723 = vadd.f32 %v1533, %v1718
    %v1724 = vadd.f32 %v1536, %v1721
    %1725 = vrot.lane.b32.xlu0 %v1165, 104
    %v1726 = vpop.permute.xlu0 %1725
    %1727 = vrot.lane.b32.xlu0 %v1165, 72
    %v1728 = vpop.permute.xlu0 %1727
    %v1729 = vsel %vm176, %v1726, 0
    %v1731 = vsel %vm176, %v1728, 0
    %1733 = vmatpush.xpose.msra.mxu0 0.0
    %1734 = vmatpush.xpose.msra.mxu0 0.0
    %1735 = vmatpush.xpose.msra.mxu0 0.0
    %1736 = vmatpush.xpose.msra.mxu0 0.0
    %1737 = vmatpush.xpose.msra.mxu0 0.0
    %1738 = vmatpush.xpose.msra.mxu0 0.0
    %1739 = vmatpush.xpose.msra.mxu0 0.0
    %1740 = vmatpush.xpose.msra.mxu0 0.0
    %1741 = vmatpush.xpose.msra.mxu0 0.0
    %1742 = vmatpush.xpose.msra.mxu0 0.0
    %1743 = vmatpush.xpose.msra.mxu0 0.0
    %1744 = vmatpush.xpose.msra.mxu0 0.0
    %1745 = vmatpush.xpose.msra.mxu0 0.0
    %1746 = vmatpush.xpose.msra.mxu0 0.0
    %1747 = vmatpush.xpose.msra.mxu0 0.0
    %1748 = vmatpush.xpose.msra.mxu0 %v1731
    %1749 = vmatmul.f32.gmra.mxu0 %v1729
    %v1750 = vpop.f32.mrf.mxu0
    %v1751 = vadd.f32 0.0, %v1750
    %1752 = vdwg.mxu0
    %1753 = vrot.lane.b32.xlu0 %v1168, 104
    %v1754 = vpop.permute.xlu0 %1753
    %1755 = vrot.lane.b32.xlu0 %v1168, 72
    %v1756 = vpop.permute.xlu0 %1755
    %v1757 = vsel %vm176, %v1754, 0
    %v1759 = vsel %vm176, %v1756, 0
    %1761 = vmatpush.xpose.msra.mxu0 0.0
    %1762 = vmatpush.xpose.msra.mxu0 0.0
    %1763 = vmatpush.xpose.msra.mxu0 0.0
    %1764 = vmatpush.xpose.msra.mxu0 0.0
    %1765 = vmatpush.xpose.msra.mxu0 0.0
    %1766 = vmatpush.xpose.msra.mxu0 0.0
    %1767 = vmatpush.xpose.msra.mxu0 0.0
    %1768 = vmatpush.xpose.msra.mxu0 0.0
    %1769 = vmatpush.xpose.msra.mxu0 0.0
    %1770 = vmatpush.xpose.msra.mxu0 0.0
    %1771 = vmatpush.xpose.msra.mxu0 0.0
    %1772 = vmatpush.xpose.msra.mxu0 0.0
    %1773 = vmatpush.xpose.msra.mxu0 0.0
    %1774 = vmatpush.xpose.msra.mxu0 0.0
    %1775 = vmatpush.xpose.msra.mxu0 0.0
    %1776 = vmatpush.xpose.msra.mxu0 %v1759
    %1777 = vmatmul.f32.gmra.mxu0 %v1757
    %v1778 = vpop.f32.mrf.mxu0
    %v1779 = vadd.f32 0.0, %v1778
    %1780 = vdwg.mxu0
    %v1781 = vsel %vm176, %v1751, -inf
    %1782 = vmax.xlane.f32.xlu0 %v1781
    %v1783 = vpop.xlane.xlu0 %1782
    %v1784 = vsel %vm176, %v1779, -inf
    %1785 = vmax.xlane.f32.xlu0 %v1784
    %v1786 = vpop.xlane.xlu0 %1785
    %v1787 = vsub.f32 %v1751, %v1783
    %v1788 = vsub.f32 %v1779, %v1786
    %v1789 = vmul.f32 %v1787, 1.442695
    %v1790 = vpow.pop %v1789
    %v1791 = vmul.f32 %v1788, 1.442695
    %v1792 = vpow.pop %v1791
    %v1793 = vsel %vm176, %v1790, 0.0
    %1794 = vadd.xlane.f32.xlu0 %v1793
    %v1795 = vpop.xlane.xlu0 %1794
    %v1796 = vsel %vm176, %v1792, 0.0
    %1797 = vadd.xlane.f32.xlu0 %v1796
    %v1798 = vpop.xlane.xlu0 %1797
    %v1799 = vrcp.pop %v1795
    %v1800 = vmul.f32 %v1795, %v1799
    %v1801 = vsub.f32 1.0, %v1800
    %v1802 = vmul.f32 %v1799, %v1801
    %v1803 = vadd.f32 %v1799, %v1802
    %vm1804 = vweird.f32 %v1795
    %vm1805 = vweird.f32 %v1799
    %vm1806 = vmor %vm1804, %vm1805
    %v1807 = vsel %vm1806, %v1799, %v1803
    %v1808 = vand.u32 2147483647, %v1795
    %vm1809 = vcmp.eq.f32.partialorder %v1808, 8.507059e+37
    %v1810 = vand.u32 %v1795, 2147483648
    %v1811 = vor.u32 1.1754944e-38, %v1810
    %v1812 = vsel %vm1809, %v1811, %v1807
    %v1813 = vmul.f32 %v1790, %v1812
    %v1814 = vrcp.pop %v1798
    %v1815 = vmul.f32 %v1798, %v1814
    %v1816 = vsub.f32 1.0, %v1815
    %v1817 = vmul.f32 %v1814, %v1816
    %v1818 = vadd.f32 %v1814, %v1817
    %vm1819 = vweird.f32 %v1798
    %vm1820 = vweird.f32 %v1814
    %vm1821 = vmor %vm1819, %vm1820
    %v1822 = vsel %vm1821, %v1814, %v1818
    %v1823 = vand.u32 2147483647, %v1798
    %vm1824 = vcmp.eq.f32.partialorder %v1823, 8.507059e+37
    %v1825 = vand.u32 %v1798, 2147483648
    %v1826 = vor.u32 1.1754944e-38, %v1825
    %v1827 = vsel %vm1824, %v1826, %v1822
    %v1828 = vmul.f32 %v1792, %v1827
    %1829 = vrot.lane.b32.xlu0 %v1165, 40
    %v1830 = vpop.permute.xlu0 %1829
    %v1833 = vsel %vm176, %v1813, 0
    %1835 = vmatpush.msra.mxu0 0.0
    %1836 = vmatpush.msra.mxu0 0.0
    %1837 = vmatpush.msra.mxu0 0.0
    %1838 = vmatpush.msra.mxu0 0.0
    %1839 = vmatpush.msra.mxu0 0.0
    %1840 = vmatpush.msra.mxu0 0.0
    %1841 = vmatpush.msra.mxu0 0.0
    %1842 = vmatpush.msra.mxu0 0.0
    %1843 = vmatpush.msra.mxu0 0.0
    %1844 = vmatpush.msra.mxu0 0.0
    %1845 = vmatpush.msra.mxu0 0.0
    %1846 = vmatpush.msra.mxu0 0.0
    %1847 = vmatpush.msra.mxu0 0.0
    %1848 = vmatpush.msra.mxu0 0.0
    %1849 = vmatpush.msra.mxu0 0.0
    %1850 = vmatpush.msra.mxu0 %v1830
    %1851 = vmatmul.f32.gmra.mxu0 %v1833
    %v1852 = vpop.f32.mrf.mxu0
    %v1853 = vadd.f32 0.0, %v1852
    %1854 = vdwg.mxu0
    %1855 = vrot.lane.b32.xlu0 %v1168, 40
    %v1856 = vpop.permute.xlu0 %1855
    %v1859 = vsel %vm176, %v1828, 0
    %1861 = vmatpush.msra.mxu0 0.0
    %1862 = vmatpush.msra.mxu0 0.0
    %1863 = vmatpush.msra.mxu0 0.0
    %1864 = vmatpush.msra.mxu0 0.0
    %1865 = vmatpush.msra.mxu0 0.0
    %1866 = vmatpush.msra.mxu0 0.0
    %1867 = vmatpush.msra.mxu0 0.0
    %1868 = vmatpush.msra.mxu0 0.0
    %1869 = vmatpush.msra.mxu0 0.0
    %1870 = vmatpush.msra.mxu0 0.0
    %1871 = vmatpush.msra.mxu0 0.0
    %1872 = vmatpush.msra.mxu0 0.0
    %1873 = vmatpush.msra.mxu0 0.0
    %1874 = vmatpush.msra.mxu0 0.0
    %1875 = vmatpush.msra.mxu0 0.0
    %1876 = vmatpush.msra.mxu0 %v1856
    %1877 = vmatmul.f32.gmra.mxu0 %v1859
    %v1878 = vpop.f32.mrf.mxu0
    %v1879 = vadd.f32 0.0, %v1878
    %1880 = vdwg.mxu0
    %v1882 = vsel %vm176, %v1853, 0
    %v1885 = vsel %vm176, %v1879, 0
    %1887 = vmatpush.msra.mxu0 0.0
    %1888 = vmatpush.msra.mxu0 0.0
    %1889 = vmatpush.msra.mxu0 0.0
    %1890 = vmatpush.msra.mxu0 0.0
    %1891 = vmatpush.msra.mxu0 0.0
    %1892 = vmatpush.msra.mxu0 0.0
    %1893 = vmatpush.msra.mxu0 0.0
    %1894 = vmatpush.msra.mxu0 0.0
    %1895 = vmatpush.msra.mxu0 0.0
    %1896 = vmatpush.msra.mxu0 0.0
    %1897 = vmatpush.msra.mxu0 0.0
    %1898 = vmatpush.msra.mxu0 0.0
    %1899 = vmatpush.msra.mxu0 0.0
    %1900 = vmatpush.msra.mxu0 0.0
    %1901 = vmatpush.msra.mxu0 0.0
    %1902 = vmatpush.msra.mxu0 %v1137
    %1903 = vmatmul.f32.gmra.mxu0 %v1882
    %v1904 = vpop.f32.mrf.mxu0
    %v1905 = vadd.f32 0.0, %v1904
    %1906 = vmatmul.f32.gmra.mxu0 %v1885
    %v1907 = vpop.f32.mrf.mxu0
    %v1908 = vadd.f32 0.0, %v1907
    %1909 = vdwg.mxu0
    %v1910 = vadd.f32 %v1723, %v1905
    %v1911 = vadd.f32 %v1724, %v1908
    %s1912 = scalar_lea.vmem %s4, 1
    %v1913 = vld [vmem:[%s1912] sm:$0x1]
    %v1915 = vperm.slane %v1913, 0
    %v1917 = vadd.f32 %v1910, %v1915
    %v1918 = vadd.f32 %v1911, %v1915
    %v1919 = vadd.f32 %v1124, %v1917
    %v1920 = vadd.f32 %v1125, %v1918
    %s1921 = scalar_lea.vmem %s9, 1
    %v1922 = vld [vmem:[%s1921] sm:$0x1]
    %s1923 = scalar_lea.vmem %s10, 1
    %v1924 = vld [vmem:[%s1923] sm:$0x1]
    %v1925 = vsel %vm143, %v1919, 0.0
    %1926 = vadd.xlane.f32.xlu0 %v1925
    %v1927 = vpop.xlane.xlu0 %1926
    %v1928 = vsel %vm143, %v1920, 0.0
    %1929 = vadd.xlane.f32.xlu0 %v1928
    %v1930 = vpop.xlane.xlu0 %1929
    %v1931 = vmul.f32 %v1927, %v938
    %v1932 = vmul.f32 %v1930, %v938
    %v1933 = vsub.f32 %v1919, %v1931
    %v1934 = vsub.f32 %v1920, %v1932
    %v1935 = vmul.f32 %v1933, %v1933
    %v1936 = vmul.f32 %v1934, %v1934
    %v1937 = vsel %vm143, %v1935, 0.0
    %1938 = vadd.xlane.f32.xlu0 %v1937
    %v1939 = vpop.xlane.xlu0 %1938
    %v1940 = vsel %vm143, %v1936, 0.0
    %1941 = vadd.xlane.f32.xlu0 %v1940
    %v1942 = vpop.xlane.xlu0 %1941
    %v1943 = vmul.f32 %v1939, %v938
    %v1944 = vmul.f32 %v1942, %v938
    %v1945 = vadd.f32 %v1943, 1e-05
    %v1946 = vadd.f32 %v1944, 1e-05
    %v1947 = vrsqrt.pop %v1945
    %v1948 = vmul.f32 %v1947, %v1945
    %v1949 = vmul.f32 %v1948, %v1947
    %v1950 = vmul.f32 0.5, %v1949
    %v1951 = vsub.f32 1.5, %v1950
    %v1952 = vmul.f32 %v1947, %v1951
    %vm1953 = vweird.f32 %v1945
    %vm1954 = vweird.f32 %v1947
    %vm1955 = vmor %vm1953, %vm1954
    %v1956 = vsel %vm1955, %v1947, %v1952
    %v1957 = vrsqrt.pop %v1946
    %v1958 = vmul.f32 %v1957, %v1946
    %v1959 = vmul.f32 %v1958, %v1957
    %v1960 = vmul.f32 0.5, %v1959
    %v1961 = vsub.f32 1.5, %v1960
    %v1962 = vmul.f32 %v1957, %v1961
    %vm1963 = vweird.f32 %v1946
    %vm1964 = vweird.f32 %v1957
    %vm1965 = vmor %vm1963, %vm1964
    %v1966 = vsel %vm1965, %v1957, %v1962
    %v1967 = vmul.f32 %v1933, %v1956
    %v1968 = vmul.f32 %v1934, %v1966
    %v1970 = vperm.slane %v1922, 0
    %v1972 = vmul.f32 %v1967, %v1970
    %v1973 = vmul.f32 %v1968, %v1970
    %v1975 = vperm.slane %v1924, 0
    %v1977 = vadd.f32 %v1972, %v1975
    %v1978 = vadd.f32 %v1973, %v1975
    %s1979 = scalar_lea.vmem %s5, 32
    %v1980 = vld [vmem:[%s1979] sm:$0xff]
    %v1981 = vld [vmem:[%s1979 + $0x8] sm:$0xff]
    %v1982 = vld [vmem:[%s1979 + $0x10] sm:$0xff]
    %v1983 = vld [vmem:[%s1979 + $0x18] sm:$0xff]
    %s1984 = scalar_lea.vmem %s6, 1
    %v1985 = vld [vmem:[%s1984] sm:$0x1]
    %v1987 = vperm.slane %v1985, 0
    %v1990 = vsel %vm143, %v1977, 0
    %v1993 = vsel %vm143, %v1978, 0
    %1995 = vmatpush.msra.mxu0 0.0
    %1996 = vmatpush.msra.mxu0 0.0
    %1997 = vmatpush.msra.mxu0 0.0
    %1998 = vmatpush.msra.mxu0 0.0
    %1999 = vmatpush.msra.mxu0 0.0
    %2000 = vmatpush.msra.mxu0 0.0
    %2001 = vmatpush.msra.mxu0 0.0
    %2002 = vmatpush.msra.mxu0 0.0
    %2003 = vmatpush.msra.mxu0 0.0
    %2004 = vmatpush.msra.mxu0 0.0
    %2005 = vmatpush.msra.mxu0 0.0
    %2006 = vmatpush.msra.mxu0 0.0
    %2007 = vmatpush.msra.mxu0 %v1983
    %2008 = vmatpush.msra.mxu0 %v1982
    %2009 = vmatpush.msra.mxu0 %v1981
    %2010 = vmatpush.msra.mxu0 %v1980
    %2011 = vmatmul.f32.gmra.mxu0 %v1990
    %v2012 = vpop.f32.mrf.mxu0
    %v2013 = vadd.f32 %v1987, %v2012
    %2014 = vmatmul.f32.gmra.mxu0 %v1993
    %v2015 = vpop.f32.mrf.mxu0
    %v2016 = vadd.f32 %v1987, %v2015
    %2017 = vdwg.mxu0
    %v2018 = vmax.f32 %v2013, 0.0
    %v2019 = vmax.f32 %v2016, 0.0
    %s2020 = scalar_lea.vmem %s7, 64
    %v2021 = vld [vmem:[%s2020] sm:$0xff]
    %v2022 = vld [vmem:[%s2020 + $0x8] sm:$0xff]
    %v2023 = vld [vmem:[%s2020 + $0x10] sm:$0xff]
    %v2024 = vld [vmem:[%s2020 + $0x18] sm:$0xff]
    %v2025 = vld [vmem:[%s2020 + $0x20] sm:$0xff]
    %v2026 = vld [vmem:[%s2020 + $0x28] sm:$0xff]
    %v2027 = vld [vmem:[%s2020 + $0x30] sm:$0xff]
    %v2028 = vld [vmem:[%s2020 + $0x38] sm:$0xff]
    %s2029 = scalar_lea.vmem [#allocation7], 1
    %v2030 = vld [vmem:[%s2029] sm:$0x1]
    %v2032 = vperm.slane %v2030, 0
    %v2035 = vsel %vm1038, %v2018, 0
    %v2038 = vsel %vm1038, %v2019, 0
    %2040 = vmatpush.msra.mxu0 0.0
    %2041 = vmatpush.msra.mxu0 0.0
    %2042 = vmatpush.msra.mxu0 0.0
    %2043 = vmatpush.msra.mxu0 0.0
    %2044 = vmatpush.msra.mxu0 0.0
    %2045 = vmatpush.msra.mxu0 0.0
    %2046 = vmatpush.msra.mxu0 0.0
    %2047 = vmatpush.msra.mxu0 0.0
    %2048 = vmatpush.msra.mxu0 %v2028
    %2049 = vmatpush.msra.mxu0 %v2027
    %2050 = vmatpush.msra.mxu0 %v2026
    %2051 = vmatpush.msra.mxu0 %v2025
    %2052 = vmatpush.msra.mxu0 %v2024
    %2053 = vmatpush.msra.mxu0 %v2023
    %2054 = vmatpush.msra.mxu0 %v2022
    %2055 = vmatpush.msra.mxu0 %v2021
    %2056 = vmatmul.f32.gmra.mxu0 %v2035
    %v2057 = vpop.f32.mrf.mxu0
    %v2058 = vadd.f32 %v2032, %v2057
    %2059 = vmatmul.f32.gmra.mxu0 %v2038
    %v2060 = vpop.f32.mrf.mxu0
    %v2061 = vadd.f32 %v2032, %v2060
    %2062 = vdwg.mxu0
    %v2063 = vadd.f32 %v1977, %v2058
    %v2064 = vadd.f32 %v1978, %v2061
    %s2065 = scalar_lea.vmem [#allocation8], 1
    %v2066 = vld [vmem:[%s2065] sm:$0x1]
    %s2067 = scalar_lea.vmem %s12, 1
    %v2068 = vld [vmem:[%s2067] sm:$0x1]
    %v2069 = vsel %vm143, %v2063, 0.0
    %2070 = vadd.xlane.f32.xlu0 %v2069
    %v2071 = vpop.xlane.xlu0 %2070
    %v2072 = vsel %vm143, %v2064, 0.0
    %2073 = vadd.xlane.f32.xlu0 %v2072
    %v2074 = vpop.xlane.xlu0 %2073
    %v2075 = vmul.f32 %v2071, %v938
    %v2076 = vmul.f32 %v2074, %v938
    %v2077 = vsub.f32 %v2063, %v2075
    %v2078 = vsub.f32 %v2064, %v2076
    %v2079 = vmul.f32 %v2077, %v2077
    %v2080 = vmul.f32 %v2078, %v2078
    %v2081 = vsel %vm143, %v2079, 0.0
    %2082 = vadd.xlane.f32.xlu0 %v2081
    %v2083 = vpop.xlane.xlu0 %2082
    %v2084 = vsel %vm143, %v2080, 0.0
    %2085 = vadd.xlane.f32.xlu0 %v2084
    %v2086 = vpop.xlane.xlu0 %2085
    %v2087 = vmul.f32 %v2083, %v938
    %v2088 = vmul.f32 %v2086, %v938
    %v2089 = vadd.f32 %v2087, 1e-05
    %v2090 = vadd.f32 %v2088, 1e-05
    %v2091 = vrsqrt.pop %v2089
    %v2092 = vmul.f32 %v2091, %v2089
    %v2093 = vmul.f32 %v2092, %v2091
    %v2094 = vmul.f32 0.5, %v2093
    %v2095 = vsub.f32 1.5, %v2094
    %v2096 = vmul.f32 %v2091, %v2095
    %vm2097 = vweird.f32 %v2089
    %vm2098 = vweird.f32 %v2091
    %vm2099 = vmor %vm2097, %vm2098
    %v2100 = vsel %vm2099, %v2091, %v2096
    %v2101 = vrsqrt.pop %v2090
    %v2102 = vmul.f32 %v2101, %v2090
    %v2103 = vmul.f32 %v2102, %v2101
    %v2104 = vmul.f32 0.5, %v2103
    %v2105 = vsub.f32 1.5, %v2104
    %v2106 = vmul.f32 %v2101, %v2105
    %vm2107 = vweird.f32 %v2090
    %vm2108 = vweird.f32 %v2101
    %vm2109 = vmor %vm2107, %vm2108
    %v2110 = vsel %vm2109, %v2101, %v2106
    %v2111 = vmul.f32 %v2077, %v2100
    %v2112 = vmul.f32 %v2078, %v2110
    %v2114 = vperm.slane %v2066, 0
    %v2116 = vmul.f32 %v2111, %v2114
    %v2117 = vmul.f32 %v2112, %v2114
    %v2119 = vperm.slane %v2068, 0
    %v2121 = vadd.f32 %v2116, %v2119
    %v2122 = vadd.f32 %v2117, %v2119
    %v2123 = vld [vmem:[#allocation10] sm:$0xff]
    %v2124 = vld [vmem:[#allocation10 + $0x8] sm:$0xff]
    %v2125 = vld [vmem:[#allocation10 + $0x10] sm:$0xff]
    %v2126 = vld [vmem:[#allocation10 + $0x18] sm:$0xff]
    %v2127 = vld [vmem:[%s14] sm:$0x1]
    %v2129 = vperm.slane %v2127, 0
    %v2132 = vsel %vm143, %v2121, 0
    %v2135 = vsel %vm143, %v2122, 0
    %2137 = vmatpush.msra.mxu0 0.0
    %2138 = vmatpush.msra.mxu0 0.0
    %2139 = vmatpush.msra.mxu0 0.0
    %2140 = vmatpush.msra.mxu0 0.0
    %2141 = vmatpush.msra.mxu0 0.0
    %2142 = vmatpush.msra.mxu0 0.0
    %2143 = vmatpush.msra.mxu0 0.0
    %2144 = vmatpush.msra.mxu0 0.0
    %2145 = vmatpush.msra.mxu0 0.0
    %2146 = vmatpush.msra.mxu0 0.0
    %2147 = vmatpush.msra.mxu0 0.0
    %2148 = vmatpush.msra.mxu0 0.0
    %2149 = vmatpush.msra.mxu0 %v2126
    %2150 = vmatpush.msra.mxu0 %v2125
    %2151 = vmatpush.msra.mxu0 %v2124
    %2152 = vmatpush.msra.mxu0 %v2123
    %2153 = vmatmul.f32.gmra.mxu0 %v2132
    %v2154 = vpop.f32.mrf.mxu0
    %v2155 = vadd.f32 %v2129, %v2154
    %2156 = vmatmul.f32.gmra.mxu0 %v2135
    %v2157 = vpop.f32.mrf.mxu0
    %v2158 = vadd.f32 %v2129, %v2157
    %2159 = vdwg.mxu0
    %2160 = vst [vmem:[#allocation11] sm:$0xff] %v2155
    %2161 = vst [vmem:[#allocation11 + $0x8] sm:$0xff] %v2158
    // Predicated region
    $region82: #{tpu_custom_call.1} parent=1 // pred_check
      _
    $region83: #{tpu_custom_call.1} parent=1 // pred_check_branch
      %2163 = sbr.rel (0) target = $region85
    $region84: #{tpu_custom_call.1} parent=1 // pred_region
      %2165 = vsyncadd [#allocation4], 0
      %s2166 = sshll.u32 [#allocation11], 4
      %s2167 = int_to_ptr.vmem [resolvable:$true] %s2166
      %s2168 = sshll.u32 %s15, 4
      %s2169 = int_to_ptr.hbm [resolvable:$true] %s2168
      %2174 = dma.vmem_to_hbm [thread:$0]  %s2167, 256, %s2169, [#allocation4], 128, 128, 8
    $region85: #{tpu_custom_call.1} parent=1 // pred_fallthru
      _
    // Predicated region
    $region86: #{tpu_custom_call.1} parent=1 // pred_check
      _
    $region87: #{tpu_custom_call.1} parent=1 // pred_check_branch
      %2176 = sbr.rel (0) target = $region89
    $region88: #{tpu_custom_call.1} parent=1 // pred_region
      %2178 = dma.done [#allocation4], 256
    $region89: #{tpu_custom_call.1} parent=1 // pred_fallthru
      _
    %2179 = vsyncpa [#allocation3], 1
    %2180 = vsyncpa [#allocation6], 1
    %2181 = vsyncpa [#allocation9], 1
    %2182 = vsyncpa [#allocation4], 1

</llo_original>
